<compile_context>
chip_gen: v7x
topology: tpu7x:2x2x1
jax: 0.10.0
libtpu: 0.0.40
codegen_flags: <defaults>
</compile_context>

<pallas_src>
import math

import jax
import jax.numpy as jnp
from jax import lax
from jax.experimental import pallas as pl
from jax.experimental.pallas import tpu as pltpu


# ----------------------------------------------------------------------------
# Pallas kernel: conv_1x1 (Cin -> D, bias) + conv_3x3 (D -> D, pad 1, bias).
# grid = (N, Cin // ct): axis 0 over batch ("parallel"), axis 1 over Cin
# chunks ("arbitrary" reduction for the 1x1 conv).
# ----------------------------------------------------------------------------
def _neck_kernel(x_ref, w1_ref, b1_ref, w2_ref, b2_ref, o_ref,
                 y1_ref, pad_ref):
    # x_ref   : (1, H, W, Ct)   bf16   input chunk (NHWC)
    # w1_ref  : (Ct, D)         bf16   1x1 weight chunk
    # b1_ref  : (1, D)          f32
    # w2_ref  : (3, 3*D, D)     bf16   3x3 weight, rows indexed by kx*D + cin
    # b2_ref  : (1, D)          f32
    # o_ref   : (1, H, W, D)    f32
    # y1_ref  : (H*W, D)        f32    1x1 / 3x3 accumulator      (scratch)
    # pad_ref : (H+2, W, 3*D)   bf16   H-padded, kx-preshifted    (scratch)
    c = pl.program_id(1)
    nc = pl.num_programs(1)
    _, H, W, Ct = x_ref.shape
    D = w1_ref.shape[1]

    # ---- 1x1 conv: per-pixel matmul over the current Cin chunk -------------
    x = x_ref[0].reshape(H * W, Ct)
    part = jnp.dot(x, w1_ref[...], preferred_element_type=jnp.float32)

    @pl.when(c == 0)
    def _():
        y1_ref[...] = part + b1_ref[0]          # fold conv_1x1 bias into init

    @pl.when(c > 0)
    def _():
        y1_ref[...] += part

    # ---- 3x3 conv, only once all Cin chunks are accumulated ----------------
    @pl.when(c == nc - 1)
    def _():
        y1b = y1_ref[...].astype(jnp.bfloat16).reshape(H, W, D)
        zcol = jnp.zeros((H, 1, D), jnp.bfloat16)

        # ky halo: two zero rows.
        pad_ref[0] = jnp.zeros((W, 3 * D), jnp.bfloat16)
        pad_ref[H + 1] = jnp.zeros((W, 3 * D), jnp.bfloat16)

        # Stage the three kx taps once, channel-concatenated, so the ky taps
        # below are free leading-dim slices.  The W-halo is folded into the
        # values -> full-width, lane-aligned stores only.
        pad_ref[1:H + 1, :, 0:D] = jnp.concatenate(
            [zcol, y1b[:, :W - 1, :]], axis=1)                  # y1[h, w-1]
        pad_ref[1:H + 1, :, D:2 * D] = y1b                      # y1[h, w  ]
        pad_ref[1:H + 1, :, 2 * D:3 * D] = jnp.concatenate(
            [y1b[:, 1:, :], zcol], axis=1)                      # y1[h, w+1]

        # 3x3 conv == three (H*W, 3D) x (3D, D) bf16 matmuls, f32 accumulation.
        # y1_ref is reused as the accumulator (its contents are consumed above).
        y1_ref[...] = jnp.dot(
            pad_ref[0:H].reshape(H * W, 3 * D), w2_ref[0],
            preferred_element_type=jnp.float32)
        y1_ref[...] += jnp.dot(
            pad_ref[1:H + 1].reshape(H * W, 3 * D), w2_ref[1],
            preferred_element_type=jnp.float32)
        y1_ref[...] += jnp.dot(
            pad_ref[2:H + 2].reshape(H * W, 3 * D), w2_ref[2],
            preferred_element_type=jnp.float32)

        o_ref[0] = (y1_ref[...] + b2_ref[0]).reshape(H, W, D).astype(o_ref.dtype)


def _pick_cin_tile(cin, max_tile=512):
    """Largest multiple-of-128 divisor of cin <= max_tile (else full cin)."""
    if cin <= max_tile:
        return cin
    t = (max_tile // 128) * 128
    while t >= 128:
        if cin % t == 0:
            return t
        t -= 128
    return cin


@jax.jit
def vitdet_neck_conv(x_nchw, w1_oihw, b1, w2_oihw, b2):
    """conv_1x1(+bias) -> conv_3x3(pad=1, +bias).  NCHW in / NCHW out (f32)."""
    N, Cin, H, W = x_nchw.shape
    D = w1_oihw.shape[0]
    ct = _pick_cin_tile(Cin)
    nc = Cin // ct

    # Layout / dtype glue: bf16 operands for HBM->VMEM + native MXU path,
    # f32 accumulation inside the kernel.
    # NOTE: a fully NHWC end-to-end neck would also remove these two wrapper
    # transposes (they are the remaining HBM passes outside the kernel).
    x_nhwc = jnp.transpose(x_nchw, (0, 2, 3, 1)).astype(jnp.bfloat16)
    w1 = jnp.transpose(w1_oihw[:, :, 0, 0], (1, 0)).astype(jnp.bfloat16)   # (Cin, D)
    # (cout, cin, ky, kx) -> (ky, kx, cin, cout) -> (3, 3*D, D): rows = kx*D+cin
    w2 = jnp.transpose(w2_oihw, (2, 3, 1, 0)).reshape(3, 3 * D, D).astype(jnp.bfloat16)
    b1_2d = b1.reshape(1, D).astype(jnp.float32)
    b2_2d = b2.reshape(1, D).astype(jnp.float32)

    y_nhwc = pl.pallas_call(
        _neck_kernel,
        out_shape=jax.ShapeDtypeStruct((N, H, W, D), jnp.float32),
        grid=(N, nc),
        in_specs=[
            pl.BlockSpec((1, H, W, ct), lambda n, c: (n, 0, 0, c)),
            pl.BlockSpec((ct, D), lambda n, c: (c, 0)),
            pl.BlockSpec((1, D), lambda n, c: (0, 0)),
            pl.BlockSpec((3, 3 * D, D), lambda n, c: (0, 0, 0)),
            pl.BlockSpec((1, D), lambda n, c: (0, 0)),
        ],
        out_specs=pl.BlockSpec((1, H, W, D), lambda n, c: (n, 0, 0, 0)),
        scratch_shapes=[
            pltpu.VMEM((H * W, D), jnp.float32),             # 1x1 / 3x3 accumulator
            pltpu.VMEM((H + 2, W, 3 * D), jnp.bfloat16),     # padded, preshifted taps
        ],
        compiler_params=pltpu.CompilerParams(
            dimension_semantics=("parallel", "arbitrary"),
            vmem_limit_bytes=40 * 1024 * 1024),
    )(x_nhwc, w1, b1_2d, w2, b2_2d)

    return jnp.transpose(y_nhwc, (0, 3, 1, 2))


# ----------------------------------------------------------------------------
# PositionEmbeddingSine (normalize=True, scale=2*pi, temperature=1e4),
# num_pos_feats = d_model.  Input-independent -> computed once and cached.
# ----------------------------------------------------------------------------
def _sin_kernel(arg_ref, o_ref):
    o_ref[...] = jnp.sin(arg_ref[...])


_POS_CACHE = {}


def position_encoding_sine(N, H, W, D, dtype, temperature=10000.0):
    key = (N, H, W, D, jnp.dtype(dtype).name)
    if key in _POS_CACHE:
        return _POS_CACHE[key]

    assert D % 2 == 0, "Expecting even model width"
    nf = D // 2
    scale = 2.0 * math.pi
    eps = 1e-6
    y_emb = jnp.arange(1, H + 1, dtype=jnp.float32) / (H + eps) * scale    # (H,)
    x_emb = jnp.arange(1, W + 1, dtype=jnp.float32) / (W + eps) * scale    # (W,)
    k = jnp.arange(nf)
    dim_t = temperature ** (2.0 * (k // 2).astype(jnp.float32) / nf)       # (nf,)

    pos_y = jnp.broadcast_to(y_emb[:, None, None] / dim_t, (H, W, nf))
    pos_x = jnp.broadcast_to(x_emb[None, :, None] / dim_t, (H, W, nf))
    arg = jnp.concatenate([pos_y, pos_x], axis=-1)                         # (H, W, D)
    # torch interleave: within each half, even channel -> sin, odd -> cos.
    # Fold cos as a +pi/2 phase so the kernel is a single sin, no select.
    phase = ((jnp.arange(D) % nf) % 2).astype(jnp.float32) * (0.5 * math.pi)
    arg = arg + phase[None, None, :]

    pos_hwd = pl.pallas_call(
        _sin_kernel,
        out_shape=jax.ShapeDtypeStruct((H, W, D), jnp.float32),
    )(arg)

    pos = jnp.broadcast_to(jnp.transpose(pos_hwd, (2, 0, 1))[None],
                           (N, D, H, W)).astype(dtype)
    _POS_CACHE[key] = pos
    return pos


# ----------------------------------------------------------------------------
# ViTDetNeck wrapper (semantics of the PyTorch forward; NCHW in / NCHW out).
# ----------------------------------------------------------------------------
class ViTDetNeckPallas:
    def __init__(self, d_model, backbone_channel_list, key):
        # neck_norm is None -> use_bias=True, no LayerNorm2d modules.
        self.d_model = d_model
        self.backbone_channel_list = backbone_channel_list
        self.params = []
        for dim in backbone_channel_list:
            key, k1, k2, k3, k4 = jax.random.split(key, 5)
            w1 = 0.1 * jax.random.normal(k1, (d_model, dim, 1, 1), jnp.float32)
            b1 = 0.1 * jax.random.normal(k2, (d_model,), jnp.float32)
            w2 = 0.1 * jax.random.normal(k3, (d_model, d_model, 3, 3), jnp.float32)
            b2 = 0.1 * jax.random.normal(k4, (d_model,), jnp.float32)
            self.params.append((w1, b1, w2, b2))

    def __call__(self, xs):
        assert len(xs) == len(self.params)
        out = [None] * len(self.params)
        pos = [None] * len(self.params)

        x = xs[0]                                       # (N, Cin, H, W)
        w1, b1, w2, b2 = self.params[0]
        N, _, H, W = x.shape

        x_out = vitdet_neck_conv(x, w1, b1, w2, b2)     # (N, D, H, W)
        out[0] = x_out
        pos[0] = position_encoding_sine(N, H, W, self.d_model, x_out.dtype)
        return out, pos


# ----------------------------------------------------------------------------
# References for correctness checks.
# ----------------------------------------------------------------------------
def reference_conv(x_nchw, w1_oihw, b1, w2_oihw, b2):
    """XLA reference with the same bf16-operand / f32-accumulate numerics."""
    dn = ("NCHW", "OIHW", "NCHW")
    y1 = lax.conv_general_dilated(
        x_nchw.astype(jnp.bfloat16), w1_oihw.astype(jnp.bfloat16), (1, 1),
        "VALID", dimension_numbers=dn,
        preferred_element_type=jnp.float32) + b1[None, :, None, None]
    y2 = lax.conv_general_dilated(
        y1.astype(jnp.bfloat16), w2_oihw.astype(jnp.bfloat16), (1, 1),
        ((1, 1), (1, 1)), dimension_numbers=dn,
        preferred_element_type=jnp.float32) + b2[None, :, None, None]
    return y2


def reference_pos_enc(N, H, W, D, temperature=10000.0):
    """Direct transcription of PositionEmbeddingSine (normalize=True)."""
    nf = D // 2
    scale = 2.0 * math.pi
    eps = 1e-6
    y_emb = jnp.arange(1, H + 1, dtype=jnp.float32) / (H + eps) * scale
    x_emb = jnp.arange(1, W + 1, dtype=jnp.float32) / (W + eps) * scale
    k = jnp.arange(nf)
    dim_t = temperature ** (2.0 * (k // 2).astype(jnp.float32) / nf)
    pos_y = jnp.broadcast_to(y_emb[:, None, None] / dim_t, (H, W, nf))
    pos_x = jnp.broadcast_to(x_emb[None, :, None] / dim_t, (H, W, nf))

    def interleave(a):
        s = jnp.sin(a[..., 0::2])
        c = jnp.cos(a[..., 1::2])
        return jnp.stack([s, c], axis=-1).reshape(H, W, nf)

    pos = jnp.concatenate([interleave(pos_y), interleave(pos_x)], axis=-1)
    pos = jnp.transpose(pos, (2, 0, 1))[None]
    return jnp.broadcast_to(pos, (N, D, H, W))


if __name__ == "__main__":
    key = jax.random.PRNGKey(0)
    k_in, k_par = jax.random.split(key)

    N, Cin, H, W, D = 2, 4, 16, 16, 32
    x = jax.random.normal(k_in, (N, Cin, H, W), jnp.float32)

    neck = ViTDetNeckPallas(d_model=D, backbone_channel_list=[Cin], key=k_par)
    out, pos = neck([x])

    out0 = jax.block_until_ready(out[0])
    pos0 = jax.block_until_ready(pos[0])
    assert out0.shape == (N, D, H, W), out0.shape
    assert pos0.shape == (N, D, H, W), pos0.shape

    # Conv path vs. XLA reference (matching bf16-operand numerics).
    w1, b1, w2, b2 = neck.params[0]
    ref = reference_conv(x, w1, b1, w2, b2)
    err = float(jnp.max(jnp.abs(out0 - ref)))
    assert err < 2e-2, f"conv max abs err {err}"

    # Position encoding vs. direct sin/cos-interleave reference.
    pref = reference_pos_enc(N, H, W, D)
    perr = float(jnp.max(jnp.abs(pos0 - pref)))
    assert perr < 1e-4, f"pos max abs err {perr}"

    print("KERNEL_OK")
</pallas_src>

<mosaic_0001>
module attributes {stable_mosaic.version = 11 : i64} {
  func.func @_neck_kernel(%arg0: i32, %arg1: i32, %arg2: memref<1x16x16x4xbf16, #tpu.memory_space<vmem>>, %arg3: memref<4x32xbf16, #tpu.memory_space<vmem>>, %arg4: memref<1x32xf32, #tpu.memory_space<vmem>>, %arg5: memref<3x96x32xbf16, #tpu.memory_space<vmem>>, %arg6: memref<1x32xf32, #tpu.memory_space<vmem>>, %arg7: memref<1x16x16x32xf32, #tpu.memory_space<vmem>>, %arg8: memref<256x32xf32, #tpu.memory_space<vmem>>, %arg9: memref<18x16x96xbf16, #tpu.memory_space<vmem>>) attributes {dimension_semantics = [#tpu.dimension_semantics<parallel>, #tpu.dimension_semantics<arbitrary>], iteration_bounds = array<i64: 2, 1>, scalar_prefetch = 0 : i64, scratch_operands = 2 : i64, tpu.core_type = #tpu.core_type<tc>, window_params = [{transform_indices = @transform_0, window_bounds = array<i64: 1, 16, 16, 4>}, {transform_indices = @transform_1, window_bounds = array<i64: 4, 32>}, {pipeline_mode = #tpu.pipeline_mode<synchronous>, transform_indices = @transform_2, window_bounds = array<i64: 1, 32>}, {pipeline_mode = #tpu.pipeline_mode<synchronous>, transform_indices = @transform_3, window_bounds = array<i64: 3, 96, 32>}, {pipeline_mode = #tpu.pipeline_mode<synchronous>, transform_indices = @transform_4, window_bounds = array<i64: 1, 32>}, {transform_indices = @transform_5, window_bounds = array<i64: 1, 16, 16, 32>}]} {
    %c0 = arith.constant 0 : index
    %c0_0 = arith.constant 0 : index
    %c0_1 = arith.constant 0 : index
    %c0_2 = arith.constant 0 : index
    %0 = vector.load %arg2[%c0, %c0_0, %c0_1, %c0_2] : memref<1x16x16x4xbf16, #tpu.memory_space<vmem>>, vector<1x16x16x4xbf16>
    %1 = vector.shape_cast %0 : vector<1x16x16x4xbf16> to vector<16x16x4xbf16>
    %2 = vector.shape_cast %1 : vector<16x16x4xbf16> to vector<256x4xbf16>
    %c0_3 = arith.constant 0 : index
    %c0_4 = arith.constant 0 : index
    %3 = vector.load %arg3[%c0_3, %c0_4] : memref<4x32xbf16, #tpu.memory_space<vmem>>, vector<4x32xbf16>
    %cst = arith.constant dense<0.000000e+00> : vector<256x32xf32>
    %4 = tpu.matmul %2, %3, %cst {dimension_numbers = #tpu.dot_dimension_numbers<[1], [0], [0], [1], [0, 0, 1, 1], [], []>} : vector<256x4xbf16>, vector<4x32xbf16>, vector<256x32xf32> -> vector<256x32xf32>
    %c0_i32 = arith.constant 0 : i32
    %5 = arith.cmpi eq, %arg1, %c0_i32 : i32
    %6 = arith.extui %5 : i1 to i32
    %c0_i32_5 = arith.constant 0 : i32
    %7 = arith.cmpi ne, %6, %c0_i32_5 : i32
    scf.if %7 {
      %c0_10 = arith.constant 0 : index
      %c0_11 = arith.constant 0 : index
      %14 = vector.load %arg4[%c0_10, %c0_11] : memref<1x32xf32, #tpu.memory_space<vmem>>, vector<1x32xf32>
      %15 = vector.shape_cast %14 : vector<1x32xf32> to vector<32xf32>
      %16 = vector.shape_cast %15 : vector<32xf32> to vector<1x32xf32>
      %17 = vector.broadcast %16 : vector<1x32xf32> to vector<256x32xf32>
      %18 = arith.addf %4, %17 : vector<256x32xf32>
      %c0_12 = arith.constant 0 : index
      %c0_13 = arith.constant 0 : index
      %19 = vector.load %arg8[%c0_12, %c0_13] : memref<256x32xf32, #tpu.memory_space<vmem>>, vector<256x32xf32>
      tpu.vector_store %arg8[%c0_12, %c0_13], %18 {strides = array<i32>} : memref<256x32xf32, #tpu.memory_space<vmem>>, vector<256x32xf32>,
    } else {
    }
    %c0_i32_6 = arith.constant 0 : i32
    %8 = arith.cmpi sgt, %arg1, %c0_i32_6 : i32
    %9 = arith.extui %8 : i1 to i32
    %c0_i32_7 = arith.constant 0 : i32
    %10 = arith.cmpi ne, %9, %c0_i32_7 : i32
    scf.if %10 {
      %c0_10 = arith.constant 0 : index
      %c0_11 = arith.constant 0 : index
      %14 = vector.load %arg8[%c0_10, %c0_11] : memref<256x32xf32, #tpu.memory_space<vmem>>, vector<256x32xf32>
      %15 = arith.addf %14, %4 : vector<256x32xf32>
      %c0_12 = arith.constant 0 : index
      %c0_13 = arith.constant 0 : index
      %16 = vector.load %arg8[%c0_12, %c0_13] : memref<256x32xf32, #tpu.memory_space<vmem>>, vector<256x32xf32>
      tpu.vector_store %arg8[%c0_12, %c0_13], %15 {strides = array<i32>} : memref<256x32xf32, #tpu.memory_space<vmem>>, vector<256x32xf32>,
    } else {
    }
    %c0_i32_8 = arith.constant 0 : i32
    %11 = arith.cmpi eq, %arg1, %c0_i32_8 : i32
    %12 = arith.extui %11 : i1 to i32
    %c0_i32_9 = arith.constant 0 : i32
    %13 = arith.cmpi ne, %12, %c0_i32_9 : i32
    scf.if %13 {
      %c0_10 = arith.constant 0 : index
      %c0_11 = arith.constant 0 : index
      %14 = vector.load %arg8[%c0_10, %c0_11] : memref<256x32xf32, #tpu.memory_space<vmem>>, vector<256x32xf32>
      %15 = arith.truncf %14 : vector<256x32xf32> to vector<256x32xbf16>
      %16 = vector.shape_cast %15 : vector<256x32xbf16> to vector<16x16x32xbf16>
      %cst_12 = arith.constant 0.000000e+00 : bf16
      %17 = vector.broadcast %cst_12 : bf16 to vector<16x1x32xbf16>
      %cst_13 = arith.constant 0.000000e+00 : bf16
      %18 = vector.broadcast %cst_13 : bf16 to vector<16x96xbf16>
      %c0_14 = arith.constant 0 : index
      %c0_15 = arith.constant 0 : index
      %c0_16 = arith.constant 0 : index
      %19 = vector.load %arg9[%c0_14, %c0_15, %c0_16] : memref<18x16x96xbf16, #tpu.memory_space<vmem>>, vector<1x16x96xbf16>
      %20 = vector.shape_cast %19 : vector<1x16x96xbf16> to vector<16x96xbf16>
      %21 = vector.shape_cast %18 : vector<16x96xbf16> to vector<1x16x96xbf16>
      tpu.vector_store %arg9[%c0_14, %c0_15, %c0_16], %21 {strides = array<i32>} : memref<18x16x96xbf16, #tpu.memory_space<vmem>>, vector<1x16x96xbf16>,
      %cst_17 = arith.constant 0.000000e+00 : bf16
      %22 = vector.broadcast %cst_17 : bf16 to vector<16x96xbf16>
      %c17 = arith.constant 17 : index
      %c0_18 = arith.constant 0 : index
      %c0_19 = arith.constant 0 : index
      %23 = vector.load %arg9[%c17, %c0_18, %c0_19] : memref<18x16x96xbf16, #tpu.memory_space<vmem>>, vector<1x16x96xbf16>
      %24 = vector.shape_cast %23 : vector<1x16x96xbf16> to vector<16x96xbf16>
      %25 = vector.shape_cast %22 : vector<16x96xbf16> to vector<1x16x96xbf16>
      tpu.vector_store %arg9[%c17, %c0_18, %c0_19], %25 {strides = array<i32>} : memref<18x16x96xbf16, #tpu.memory_space<vmem>>, vector<1x16x96xbf16>,
      %26 = vector.extract_strided_slice %16 {offsets = [0, 0, 0], sizes = [16, 15, 32], strides = [1, 1, 1]} : vector<16x16x32xbf16> to vector<16x15x32xbf16>
      %27 = tpu.concatenate %17, %26 in 1 : vector<16x1x32xbf16>, vector<16x15x32xbf16> -> vector<16x16x32xbf16>
      %c1 = arith.constant 1 : index
      %c0_20 = arith.constant 0 : index
      %c0_21 = arith.constant 0 : index
      %28 = vector.load %arg9[%c1, %c0_20, %c0_21] : memref<18x16x96xbf16, #tpu.memory_space<vmem>>, vector<16x16x32xbf16>
      tpu.vector_store %arg9[%c1, %c0_20, %c0_21], %27 {strides = array<i32>} : memref<18x16x96xbf16, #tpu.memory_space<vmem>>, vector<16x16x32xbf16>,
      %c1_22 = arith.constant 1 : index
      %c0_23 = arith.constant 0 : index
      %c32 = arith.constant 32 : index
      %29 = vector.load %arg9[%c1_22, %c0_23, %c32] : memref<18x16x96xbf16, #tpu.memory_space<vmem>>, vector<16x16x32xbf16>
      tpu.vector_store %arg9[%c1_22, %c0_23, %c32], %16 {strides = array<i32>} : memref<18x16x96xbf16, #tpu.memory_space<vmem>>, vector<16x16x32xbf16>,
      %30 = vector.extract_strided_slice %16 {offsets = [0, 1, 0], sizes = [16, 15, 32], strides = [1, 1, 1]} : vector<16x16x32xbf16> to vector<16x15x32xbf16>
      %31 = tpu.concatenate %30, %17 in 1 : vector<16x15x32xbf16>, vector<16x1x32xbf16> -> vector<16x16x32xbf16>
      %c1_24 = arith.constant 1 : index
      %c0_25 = arith.constant 0 : index
      %c64 = arith.constant 64 : index
      %32 = vector.load %arg9[%c1_24, %c0_25, %c64] : memref<18x16x96xbf16, #tpu.memory_space<vmem>>, vector<16x16x32xbf16>
      tpu.vector_store %arg9[%c1_24, %c0_25, %c64], %31 {strides = array<i32>} : memref<18x16x96xbf16, #tpu.memory_space<vmem>>, vector<16x16x32xbf16>,
      %c0_26 = arith.constant 0 : index
      %c0_27 = arith.constant 0 : index
      %c0_28 = arith.constant 0 : index
      %33 = vector.load %arg9[%c0_26, %c0_27, %c0_28] : memref<18x16x96xbf16, #tpu.memory_space<vmem>>, vector<16x16x96xbf16>
      %34 = vector.shape_cast %33 : vector<16x16x96xbf16> to vector<256x96xbf16>
      %c0_29 = arith.constant 0 : index
      %c0_30 = arith.constant 0 : index
      %c0_31 = arith.constant 0 : index
      %35 = vector.load %arg5[%c0_29, %c0_30, %c0_31] : memref<3x96x32xbf16, #tpu.memory_space<vmem>>, vector<1x96x32xbf16>
      %36 = vector.shape_cast %35 : vector<1x96x32xbf16> to vector<96x32xbf16>
      %cst_32 = arith.constant dense<0.000000e+00> : vector<256x32xf32>
      %37 = tpu.matmul %34, %36, %cst_32 {dimension_numbers = #tpu.dot_dimension_numbers<[1], [0], [0], [1], [0, 0, 1, 1], [], []>} : vector<256x96xbf16>, vector<96x32xbf16>, vector<256x32xf32> -> vector<256x32xf32>
      %c0_33 = arith.constant 0 : index
      %c0_34 = arith.constant 0 : index
      %38 = vector.load %arg8[%c0_33, %c0_34] : memref<256x32xf32, #tpu.memory_space<vmem>>, vector<256x32xf32>
      tpu.vector_store %arg8[%c0_33, %c0_34], %37 {strides = array<i32>} : memref<256x32xf32, #tpu.memory_space<vmem>>, vector<256x32xf32>,
      %c0_35 = arith.constant 0 : index
      %c0_36 = arith.constant 0 : index
      %39 = vector.load %arg8[%c0_35, %c0_36] : memref<256x32xf32, #tpu.memory_space<vmem>>, vector<256x32xf32>
      %c1_37 = arith.constant 1 : index
      %c0_38 = arith.constant 0 : index
      %c0_39 = arith.constant 0 : index
      %40 = vector.load %arg9[%c1_37, %c0_38, %c0_39] : memref<18x16x96xbf16, #tpu.memory_space<vmem>>, vector<16x16x96xbf16>
      %41 = vector.shape_cast %40 : vector<16x16x96xbf16> to vector<256x96xbf16>
      %c1_40 = arith.constant 1 : index
      %c0_41 = arith.constant 0 : index
      %c0_42 = arith.constant 0 : index
      %42 = vector.load %arg5[%c1_40, %c0_41, %c0_42] : memref<3x96x32xbf16, #tpu.memory_space<vmem>>, vector<1x96x32xbf16>
      %43 = vector.shape_cast %42 : vector<1x96x32xbf16> to vector<96x32xbf16>
      %cst_43 = arith.constant dense<0.000000e+00> : vector<256x32xf32>
      %44 = tpu.matmul %41, %43, %cst_43 {dimension_numbers = #tpu.dot_dimension_numbers<[1], [0], [0], [1], [0, 0, 1, 1], [], []>} : vector<256x96xbf16>, vector<96x32xbf16>, vector<256x32xf32> -> vector<256x32xf32>
      %45 = arith.addf %39, %44 : vector<256x32xf32>
      %c0_44 = arith.constant 0 : index
      %c0_45 = arith.constant 0 : index
      %46 = vector.load %arg8[%c0_44, %c0_45] : memref<256x32xf32, #tpu.memory_space<vmem>>, vector<256x32xf32>
      tpu.vector_store %arg8[%c0_44, %c0_45], %45 {strides = array<i32>} : memref<256x32xf32, #tpu.memory_space<vmem>>, vector<256x32xf32>,
      %c0_46 = arith.constant 0 : index
      %c0_47 = arith.constant 0 : index
      %47 = vector.load %arg8[%c0_46, %c0_47] : memref<256x32xf32, #tpu.memory_space<vmem>>, vector<256x32xf32>
      %c2 = arith.constant 2 : index
      %c0_48 = arith.constant 0 : index
      %c0_49 = arith.constant 0 : index
      %48 = vector.load %arg9[%c2, %c0_48, %c0_49] : memref<18x16x96xbf16, #tpu.memory_space<vmem>>, vector<16x16x96xbf16>
      %49 = vector.shape_cast %48 : vector<16x16x96xbf16> to vector<256x96xbf16>
      %c2_50 = arith.constant 2 : index
      %c0_51 = arith.constant 0 : index
      %c0_52 = arith.constant 0 : index
      %50 = vector.load %arg5[%c2_50, %c0_51, %c0_52] : memref<3x96x32xbf16, #tpu.memory_space<vmem>>, vector<1x96x32xbf16>
      %51 = vector.shape_cast %50 : vector<1x96x32xbf16> to vector<96x32xbf16>
      %cst_53 = arith.constant dense<0.000000e+00> : vector<256x32xf32>
      %52 = tpu.matmul %49, %51, %cst_53 {dimension_numbers = #tpu.dot_dimension_numbers<[1], [0], [0], [1], [0, 0, 1, 1], [], []>} : vector<256x96xbf16>, vector<96x32xbf16>, vector<256x32xf32> -> vector<256x32xf32>
      %53 = arith.addf %47, %52 : vector<256x32xf32>
      %c0_54 = arith.constant 0 : index
      %c0_55 = arith.constant 0 : index
      %54 = vector.load %arg8[%c0_54, %c0_55] : memref<256x32xf32, #tpu.memory_space<vmem>>, vector<256x32xf32>
      tpu.vector_store %arg8[%c0_54, %c0_55], %53 {strides = array<i32>} : memref<256x32xf32, #tpu.memory_space<vmem>>, vector<256x32xf32>,
      %c0_56 = arith.constant 0 : index
      %c0_57 = arith.constant 0 : index
      %55 = vector.load %arg8[%c0_56, %c0_57] : memref<256x32xf32, #tpu.memory_space<vmem>>, vector<256x32xf32>
      %c0_58 = arith.constant 0 : index
      %c0_59 = arith.constant 0 : index
      %56 = vector.load %arg6[%c0_58, %c0_59] : memref<1x32xf32, #tpu.memory_space<vmem>>, vector<1x32xf32>
      %57 = vector.shape_cast %56 : vector<1x32xf32> to vector<32xf32>
      %58 = vector.shape_cast %57 : vector<32xf32> to vector<1x32xf32>
      %59 = vector.broadcast %58 : vector<1x32xf32> to vector<256x32xf32>
      %60 = arith.addf %55, %59 : vector<256x32xf32>
      %61 = vector.shape_cast %60 : vector<256x32xf32> to vector<16x16x32xf32>
      %c0_60 = arith.constant 0 : index
      %c0_61 = arith.constant 0 : index
      %c0_62 = arith.constant 0 : index
      %c0_63 = arith.constant 0 : index
      %62 = vector.load %arg7[%c0_60, %c0_61, %c0_62, %c0_63] : memref<1x16x16x32xf32, #tpu.memory_space<vmem>>, vector<1x16x16x32xf32>
      %63 = vector.shape_cast %62 : vector<1x16x16x32xf32> to vector<16x16x32xf32>
      %64 = vector.shape_cast %61 : vector<16x16x32xf32> to vector<1x16x16x32xf32>
      tpu.vector_store %arg7[%c0_60, %c0_61, %c0_62, %c0_63], %64 {strides = array<i32>} : memref<1x16x16x32xf32, #tpu.memory_space<vmem>>, vector<1x16x16x32xf32>,
    } else {
    }
    return
  }
  func.func @transform_0(%arg0: i32, %arg1: i32) -> (i32, i32, i32, i32) {
    %c0_i32 = arith.constant 0 : i32
    %c0_i32_0 = arith.constant 0 : i32
    %c0_i32_1 = arith.constant 0 : i32
    return %arg0, %c0_i32, %c0_i32_0, %arg1 : i32, i32, i32, i32
  }
  func.func @transform_1(%arg0: i32, %arg1: i32) -> (i32, i32) {
    %c0_i32 = arith.constant 0 : i32
    %c0_i32_0 = arith.constant 0 : i32
    return %arg1, %c0_i32 : i32, i32
  }
  func.func @transform_2(%arg0: i32, %arg1: i32) -> (i32, i32) {
    %c0_i32 = arith.constant 0 : i32
    %c0_i32_0 = arith.constant 0 : i32
    %c0_i32_1 = arith.constant 0 : i32
    return %c0_i32, %c0_i32_0 : i32, i32
  }
  func.func @transform_3(%arg0: i32, %arg1: i32) -> (i32, i32, i32) {
    %c0_i32 = arith.constant 0 : i32
    %c0_i32_0 = arith.constant 0 : i32
    %c0_i32_1 = arith.constant 0 : i32
    %c0_i32_2 = arith.constant 0 : i32
    return %c0_i32, %c0_i32_0, %c0_i32_1 : i32, i32, i32
  }
  func.func @transform_4(%arg0: i32, %arg1: i32) -> (i32, i32) {
    %c0_i32 = arith.constant 0 : i32
    %c0_i32_0 = arith.constant 0 : i32
    %c0_i32_1 = arith.constant 0 : i32
    return %c0_i32, %c0_i32_0 : i32, i32
  }
  func.func @transform_5(%arg0: i32, %arg1: i32) -> (i32, i32, i32, i32) {
    %c0_i32 = arith.constant 0 : i32
    %c0_i32_0 = arith.constant 0 : i32
    %c0_i32_1 = arith.constant 0 : i32
    %c0_i32_2 = arith.constant 0 : i32
    return %arg0, %c0_i32, %c0_i32_0, %c0_i32_1 : i32, i32, i32, i32
  }
}

</mosaic_0001>

<llo_original>
// kernel: vitdet_neck_conv.1
$region0: #{vitdet_neck_conv.1}
  #allocation0 [shape = 'u32[]', space=smem, size = 0x4, offset = 0x4, fixed_abs, tag = 'smem constant byte address 0x4 - core index']
  #allocation1 [shape = 'u32[144,128]{1,0:T(1,128)}', space=vmem, size = 0x12000, scoped, tag = 'internal scratch']
  #allocation2 [shape = 'f32[256,32]{1,0:T(8,128)}', space=vmem, size = 0x20000, scoped, tag = 'scratch operand']
  #allocation3 [shape = 'bf16[18,16,96]{2,1,0:T(16,128)(2,1)}', space=vmem, size = 0x12000, scoped, tag = 'scratch operand']
  %s0 = inlined_call_operand.vmem [shape: bf16[2,16,16,4], index: 0, kind: input, shape index: {}]
  %s1 = inlined_call_operand.vmem [shape: bf16[4,32], index: 1, kind: input, shape index: {}]
  %s2 = inlined_call_operand.vmem [shape: f32[1,32], index: 2, kind: input, shape index: {}]
  %s3 = inlined_call_operand.vmem [shape: bf16[3,96,32], index: 3, kind: input, shape index: {}]
  %s4 = inlined_call_operand.vmem [shape: f32[1,32], index: 4, kind: input, shape index: {}]
  %s5 = inlined_call_operand.hbm [shape: f32[2,16,16,32], index: 5, kind: output, shape index: {}]
  %s6 = sld [smem:[#allocation0]]
  $region65: #{vitdet_neck_conv.1} parent=0
    _
  %s8 = ssub.s32 1, %s6
  %s9 = scalar_select 0, %s8, %s6
  $region1: #{vitdet_neck_conv.1} parent=0
    #allocation4 [shape = 'u8[262144]{0}', space=vmem, size = 0x40000, scoped, tag = 'output window, operand 0']
    #allocation5 [shape = 's32[2]{0}', space=sflag, size = 0x8, scoped, tag = 'scoped memory for vitdet_neck_conv.1']
    %10 = vsyncpa [#allocation5], 0
    %s11 = scalar_lea.sflag [#allocation5], 1
    %12 = vsyncpa %s11, 0
    loop: start=0, step=1, limit=4
    $region2: #{vitdet_neck_conv.1} parent=1 // loop_pre_header
      _
    $region3: #{vitdet_neck_conv.1} parent=1 // loop_header
      %s14 = sphi 0, %s18
      %p15 = scmp.ge.s32.totalorder %s14, 4
      %s21 = sphi 0, %s33
      %s22 = sphi 0, %s29
      %s23 = sphi 0, %s21
      %s24 = sphi 0, %s22
      %s25 = sphi 0, %s23
      %s26 = sphi 0, %s24
      %s38 = sphi 0, %s40
      %s41 = sphi 0, %s38
      %s42 = sphi 0, %s41
      %s58 = sphi 0, %s42
      %s64 = sphi 0, %s66
      %s67 = sphi 0, %s64
      %s68 = sphi 0, %s67
      %s84 = sphi 0, %s68
      %s88 = sphi 0, %s88
      %s90 = sphi 0, %s88
      %s91 = sphi 0, %s90
      %s105 = sphi 0, %s91
      %s109 = sphi 0, %s109
      %s111 = sphi 0, %s109
      %s112 = sphi 0, %s111
      %s126 = sphi 0, %s112
      %s130 = sphi 0, %s130
      %s132 = sphi 0, %s130
      %s133 = sphi 0, %s132
      %s147 = sphi 0, %s133
      %s153 = sphi 0, %s155
      %s156 = sphi 0, %s153
      %s157 = sphi 0, %s156
      %s173 = sphi 0, %s157
    $region4: #{vitdet_neck_conv.1} parent=1 // loop_header_branch
      %17 = sbr.rel (%p15) target = $region8
    $region5: #{vitdet_neck_conv.1} parent=1 // loop_body
      %s19 = ssub.s32 %s14, 1
      %s20 = ssub.s32 %s14, 2
      %s27 = sadd.s32 1, %s22
      %p28 = scmp.ge.s32.totalorder %s27, 1
      %s29 = scalar_select %p28, 0, %s27
      %s30 = sadd.s32 1, %s21
      %s31 = scalar_select %p28, %s30, %s21
      %p32 = scmp.ge.s32.totalorder %s31, 2
      %s33 = scalar_select %p32, 0, %s31
      %s34 = ssub.s32 %s21, %s33
      %s35 = ssub.s32 %s22, %s29
      %s36 = sor.u32 %s34, %s35
      %p37 = scmp.eq.s32.totalorder %s36, 0
      %s39 = sadd.s32 %s38, 1
      %s40 = scalar_select %p37, %s38, %s39
      %p43 = pneg %p37
      %p44 = scmp.eq.s32.totalorder %s14, 1
      %p45 = por %p43, %p44
      %p46 = scmp.ne.s32.totalorder %s38, %s41
      %p47 = scmp.eq.s32.totalorder %s14, 0
      %p48 = por %p46, %p47
      %p49 = scmp.ne.s32.totalorder %s38, %s41
      %p50 = scmp.eq.s32.totalorder %s19, 1
      %p51 = por %p49, %p50
      %p52 = scmp.ne.s32.totalorder %s41, %s42
      %p53 = scmp.eq.s32.totalorder %s19, 0
      %p54 = por %p52, %p53
      %p55 = scmp.ne.s32.totalorder %s41, %s42
      %p56 = scmp.eq.s32.totalorder %s20, 1
      %p57 = por %p55, %p56
      %p59 = scmp.ne.s32.totalorder %s42, %s58
      %p60 = scmp.eq.s32.totalorder %s20, 0
      %p61 = por %p59, %p60
      %s62 = ssub.s32 %s22, %s29
      %p63 = scmp.eq.s32.totalorder %s62, 0
      %s65 = sadd.s32 %s64, 1
      %s66 = scalar_select %p63, %s64, %s65
      %p69 = pneg %p63
      %p70 = scmp.eq.s32.totalorder %s14, 1
      %p71 = por %p69, %p70
      %p72 = scmp.ne.s32.totalorder %s64, %s67
      %p73 = scmp.eq.s32.totalorder %s14, 0
      %p74 = por %p72, %p73
      %p75 = scmp.ne.s32.totalorder %s64, %s67
      %p76 = scmp.eq.s32.totalorder %s19, 1
      %p77 = por %p75, %p76
      %p78 = scmp.ne.s32.totalorder %s67, %s68
      %p79 = scmp.eq.s32.totalorder %s19, 0
      %p80 = por %p78, %p79
      %p81 = scmp.ne.s32.totalorder %s67, %s68
      %p82 = scmp.eq.s32.totalorder %s20, 1
      %p83 = por %p81, %p82
      %p85 = scmp.ne.s32.totalorder %s68, %s84
      %p86 = scmp.eq.s32.totalorder %s20, 0
      %p87 = por %p85, %p86
      %s89 = sadd.s32 %s88, 1
      %p92 = scmp.eq.s32.totalorder %s14, 1
      %p93 = scmp.ne.s32.totalorder %s88, %s90
      %p94 = scmp.eq.s32.totalorder %s14, 0
      %p95 = por %p93, %p94
      %p96 = scmp.ne.s32.totalorder %s88, %s90
      %p97 = scmp.eq.s32.totalorder %s19, 1
      %p98 = por %p96, %p97
      %p99 = scmp.ne.s32.totalorder %s90, %s91
      %p100 = scmp.eq.s32.totalorder %s19, 0
      %p101 = por %p99, %p100
      %p102 = scmp.ne.s32.totalorder %s90, %s91
      %p103 = scmp.eq.s32.totalorder %s20, 1
      %p104 = por %p102, %p103
      %p106 = scmp.ne.s32.totalorder %s91, %s105
      %p107 = scmp.eq.s32.totalorder %s20, 0
      %p108 = por %p106, %p107
      %s110 = sadd.s32 %s109, 1
      %p113 = scmp.eq.s32.totalorder %s14, 1
      %p114 = scmp.ne.s32.totalorder %s109, %s111
      %p115 = scmp.eq.s32.totalorder %s14, 0
      %p116 = por %p114, %p115
      %p117 = scmp.ne.s32.totalorder %s109, %s111
      %p118 = scmp.eq.s32.totalorder %s19, 1
      %p119 = por %p117, %p118
      %p120 = scmp.ne.s32.totalorder %s111, %s112
      %p121 = scmp.eq.s32.totalorder %s19, 0
      %p122 = por %p120, %p121
      %p123 = scmp.ne.s32.totalorder %s111, %s112
      %p124 = scmp.eq.s32.totalorder %s20, 1
      %p125 = por %p123, %p124
      %p127 = scmp.ne.s32.totalorder %s112, %s126
      %p128 = scmp.eq.s32.totalorder %s20, 0
      %p129 = por %p127, %p128
      %s131 = sadd.s32 %s130, 1
      %p134 = scmp.eq.s32.totalorder %s14, 1
      %p135 = scmp.ne.s32.totalorder %s130, %s132
      %p136 = scmp.eq.s32.totalorder %s14, 0
      %p137 = por %p135, %p136
      %p138 = scmp.ne.s32.totalorder %s130, %s132
      %p139 = scmp.eq.s32.totalorder %s19, 1
      %p140 = por %p138, %p139
      %p141 = scmp.ne.s32.totalorder %s132, %s133
      %p142 = scmp.eq.s32.totalorder %s19, 0
      %p143 = por %p141, %p142
      %p144 = scmp.ne.s32.totalorder %s132, %s133
      %p145 = scmp.eq.s32.totalorder %s20, 1
      %p146 = por %p144, %p145
      %p148 = scmp.ne.s32.totalorder %s133, %s147
      %p149 = scmp.eq.s32.totalorder %s20, 0
      %p150 = por %p148, %p149
      %s151 = ssub.s32 %s21, %s33
      %p152 = scmp.eq.s32.totalorder %s151, 0
      %s154 = sadd.s32 %s153, 1
      %s155 = scalar_select %p152, %s153, %s154
      %p158 = pneg %p152
      %p159 = scmp.eq.s32.totalorder %s14, 1
      %p160 = por %p158, %p159
      %p161 = scmp.ne.s32.totalorder %s153, %s156
      %p162 = scmp.eq.s32.totalorder %s14, 0
      %p163 = por %p161, %p162
      %p164 = scmp.ne.s32.totalorder %s153, %s156
      %p165 = scmp.eq.s32.totalorder %s19, 1
      %p166 = por %p164, %p165
      %p167 = scmp.ne.s32.totalorder %s156, %s157
      %p168 = scmp.eq.s32.totalorder %s19, 0
      %p169 = por %p167, %p168
      %p170 = scmp.ne.s32.totalorder %s156, %s157
      %p171 = scmp.eq.s32.totalorder %s20, 1
      %p172 = por %p170, %p171
      %p174 = scmp.ne.s32.totalorder %s157, %s173
      %p175 = scmp.eq.s32.totalorder %s20, 0
      %p176 = por %p174, %p175
      %p177 = scmp.le.s32.totalorder 1, %s14
      %p178 = scmp.lt.s32.totalorder %s14, 3
      %p179 = pnand %p177, %p178
      %p180 = pneg %p179
      // Predicated region
      $region9: #{vitdet_neck_conv.1} parent=5 // pred_check
        _
      $region10: #{vitdet_neck_conv.1} parent=5 // pred_check_branch
        %182 = sbr.rel (%p179) target = $region12
      $region11: #{vitdet_neck_conv.1} parent=5 // pred_region
        %s183 = ssub.s32 %s14, 1
        // Predicated region
        $region13: #{vitdet_neck_conv.1} parent=11 // pred_check
          %p184 = pneg %p80
        $region14: #{vitdet_neck_conv.1} parent=11 // pred_check_branch
          %186 = sbr.rel (%p184) target = $region16
        $region15: #{vitdet_neck_conv.1} parent=11 // pred_region
          %p187 = scmp.lt.s32.totalorder %s24, 0
          %s188 = scalar_select %p187, %s24, 0
          %s189 = smul.addr %s188, 2
          %s190 = scalar_lea.vmem %s1, %s189
        $region16: #{vitdet_neck_conv.1} parent=11 // pred_fallthru
          _
        // Predicated region
        $region17: #{vitdet_neck_conv.1} parent=11 // pred_check
          %p191 = pneg %p101
        $region18: #{vitdet_neck_conv.1} parent=11 // pred_check_branch
          %193 = sbr.rel (%p191) target = $region20
        $region19: #{vitdet_neck_conv.1} parent=11 // pred_region
          _
        $region20: #{vitdet_neck_conv.1} parent=11 // pred_fallthru
          _
        // Predicated region
        $region21: #{vitdet_neck_conv.1} parent=11 // pred_check
          %p194 = pneg %p122
        $region22: #{vitdet_neck_conv.1} parent=11 // pred_check_branch
          %196 = sbr.rel (%p194) target = $region24
        $region23: #{vitdet_neck_conv.1} parent=11 // pred_region
          _
        $region24: #{vitdet_neck_conv.1} parent=11 // pred_fallthru
          _
        // Predicated region
        $region25: #{vitdet_neck_conv.1} parent=11 // pred_check
          %p197 = pneg %p143
        $region26: #{vitdet_neck_conv.1} parent=11 // pred_check_branch
          %199 = sbr.rel (%p197) target = $region28
        $region27: #{vitdet_neck_conv.1} parent=11 // pred_region
          _
        $region28: #{vitdet_neck_conv.1} parent=11 // pred_fallthru
          _
      $region12: #{vitdet_neck_conv.1} parent=5 // pred_fallthru
        _
      %p200 = scmp.lt.s32.totalorder %s14, 2
      // Predicated region
      $region29: #{vitdet_neck_conv.1} parent=5 // pred_check
        %p201 = pneg %p200
      $region30: #{vitdet_neck_conv.1} parent=5 // pred_check_branch
        %203 = sbr.rel (%p201) target = $region32
      $region31: #{vitdet_neck_conv.1} parent=5 // pred_region
        // Predicated region
        $region33: #{vitdet_neck_conv.1} parent=31 // pred_check
          %p204 = pneg %p48
        $region34: #{vitdet_neck_conv.1} parent=31 // pred_check_branch
          %206 = sbr.rel (%p204) target = $region36
        $region35: #{vitdet_neck_conv.1} parent=31 // pred_region
          %p207 = scmp.lt.s32.totalorder %s21, 1
          %s208 = scalar_select %p207, %s21, 1
          %p209 = scmp.lt.s32.totalorder %s22, 0
          %s210 = scalar_select %p209, %s22, 0
          %s211 = smul.addr %s208, 32
          %s212 = sadd.s32 %s210, %s211
          %s213 = smul.addr %s212, 4
          %s214 = scalar_lea.vmem %s0, %s213
        $region36: #{vitdet_neck_conv.1} parent=31 // pred_fallthru
          _
      $region32: #{vitdet_neck_conv.1} parent=5 // pred_fallthru
        _
      %p215 = scmp.le.s32.totalorder 1, %s14
      %p216 = scmp.lt.s32.totalorder %s14, 3
      %p217 = pnand %p215, %p216
      %p218 = pneg %p217
      // Predicated region
      $region37: #{vitdet_neck_conv.1} parent=5 // pred_check
        _
      $region38: #{vitdet_neck_conv.1} parent=5 // pred_check_branch
        %220 = sbr.rel (%p217) target = $region40
      $region39: #{vitdet_neck_conv.1} parent=5 // pred_region
        %s221 = ssub.s32 %s14, 1
        %p222 = scmp.lt.s32.totalorder %s23, 1
        %s223 = scalar_select %p222, %s23, 1
        %p224 = scmp.lt.s32.totalorder %s24, 0
        %s225 = scalar_select %p224, %s24, 0
        %s226 = smul.addr %s223, 32
        %s227 = sadd.s32 %s225, %s226
        %s228 = smul.addr %s227, 4
        %s229 = scalar_lea.vmem %s0, %s228
        %p230 = pneg %p54
        %p231 = pneg %p51
        %p232 = scmp.lt.s32.totalorder %s24, 0
        %s233 = scalar_select %p232, %s24, 0
        %s234 = smul.addr %s233, 2
        %s235 = scalar_lea.vmem %s1, %s234
        %p236 = pneg %p80
        %p237 = pneg %p77
        %p238 = pneg %p101
        %p239 = pneg %p98
        %p240 = pneg %p122
        %p241 = pneg %p119
        %p242 = pneg %p143
        %p243 = pneg %p140
        %p244 = pneg %p169
        %p245 = pneg %p166
        %s246 = sand.u32 %s156, 1
        %s247 = scalar_lea.sflag [#allocation5], %s246
        %s248 = sand.u32 %s156, 1
        %s249 = smul.addr %s248, 256
        %s250 = scalar_lea.vmem [#allocation4], %s249
        %p251 = scmp.lt.s32.totalorder %s23, 1
        %s252 = scalar_select %p251, %s23, 1
        %p253 = scmp.lt.s32.totalorder %s24, 0
        %s254 = scalar_select %p253, %s24, 0
        %s255 = smul.addr %s252, 32
        %s256 = sadd.s32 %s254, %s255
        %s257 = smul.addr %s256, 4
        %s258 = scalar_lea.vmem %s0, %s257
        %p259 = scmp.lt.s32.totalorder %s24, 0
        %s260 = scalar_select %p259, %s24, 0
        %s261 = smul.addr %s260, 2
        %s262 = scalar_lea.vmem %s1, %s261
        %v264 = vld [vmem:[%s258] sm:$0xf]
        %v265 = vld [vmem:[%s258 + $0x4] sm:$0xf]
        %v266 = vld [vmem:[%s258 + $0x8] sm:$0xf]
        %v267 = vld [vmem:[%s258 + $0xc] sm:$0xf]
        %v268 = vld [vmem:[%s258 + $0x10] sm:$0xf]
        %v269 = vld [vmem:[%s258 + $0x14] sm:$0xf]
        %v270 = vld [vmem:[%s258 + $0x18] sm:$0xf]
        %v271 = vld [vmem:[%s258 + $0x1c] sm:$0xf]
        %v272 = vld [vmem:[%s258 + $0x20] sm:$0xf]
        %v273 = vld [vmem:[%s258 + $0x24] sm:$0xf]
        %v274 = vld [vmem:[%s258 + $0x28] sm:$0xf]
        %v275 = vld [vmem:[%s258 + $0x2c] sm:$0xf]
        %v276 = vld [vmem:[%s258 + $0x30] sm:$0xf]
        %v277 = vld [vmem:[%s258 + $0x34] sm:$0xf]
        %v278 = vld [vmem:[%s258 + $0x38] sm:$0xf]
        %v279 = vld [vmem:[%s258 + $0x3c] sm:$0xf]
        %v280 = vld [vmem:[%s258 + $0x40] sm:$0xf]
        %v281 = vld [vmem:[%s258 + $0x44] sm:$0xf]
        %v282 = vld [vmem:[%s258 + $0x48] sm:$0xf]
        %v283 = vld [vmem:[%s258 + $0x4c] sm:$0xf]
        %v284 = vld [vmem:[%s258 + $0x50] sm:$0xf]
        %v285 = vld [vmem:[%s258 + $0x54] sm:$0xf]
        %v286 = vld [vmem:[%s258 + $0x58] sm:$0xf]
        %v287 = vld [vmem:[%s258 + $0x5c] sm:$0xf]
        %v288 = vld [vmem:[%s258 + $0x60] sm:$0xf]
        %v289 = vld [vmem:[%s258 + $0x64] sm:$0xf]
        %v290 = vld [vmem:[%s258 + $0x68] sm:$0xf]
        %v291 = vld [vmem:[%s258 + $0x6c] sm:$0xf]
        %v292 = vld [vmem:[%s258 + $0x70] sm:$0xf]
        %v293 = vld [vmem:[%s258 + $0x74] sm:$0xf]
        %v294 = vld [vmem:[%s258 + $0x78] sm:$0xf]
        %v295 = vld [vmem:[%s258 + $0x7c] sm:$0xf]
        %v296 = vld [vmem:[%s262] sm:$0x3]
        %v329 = vunpack.c.l.b16 %v264
        %v330 = vunpack.c.l.b16 %v265
        %v331 = vunpack.c.l.b16 %v266
        %v332 = vunpack.c.l.b16 %v267
        %v333 = vunpack.c.l.b16 %v268
        %v334 = vunpack.c.l.b16 %v269
        %v335 = vunpack.c.l.b16 %v270
        %v336 = vunpack.c.l.b16 %v271
        %v337 = vunpack.c.l.b16 %v272
        %v338 = vunpack.c.l.b16 %v273
        %v339 = vunpack.c.l.b16 %v274
        %v340 = vunpack.c.l.b16 %v275
        %v341 = vunpack.c.l.b16 %v276
        %v342 = vunpack.c.l.b16 %v277
        %v343 = vunpack.c.l.b16 %v278
        %v344 = vunpack.c.l.b16 %v279
        %v345 = vunpack.c.l.b16 %v280
        %v346 = vunpack.c.l.b16 %v281
        %v347 = vunpack.c.l.b16 %v282
        %v348 = vunpack.c.l.b16 %v283
        %v349 = vunpack.c.l.b16 %v284
        %v350 = vunpack.c.l.b16 %v285
        %v351 = vunpack.c.l.b16 %v286
        %v352 = vunpack.c.l.b16 %v287
        %v353 = vunpack.c.l.b16 %v288
        %v354 = vunpack.c.l.b16 %v289
        %v355 = vunpack.c.l.b16 %v290
        %v356 = vunpack.c.l.b16 %v291
        %v357 = vunpack.c.l.b16 %v292
        %v358 = vunpack.c.l.b16 %v293
        %v359 = vunpack.c.l.b16 %v294
        %v360 = vunpack.c.l.b16 %v295
        %v361 = vpack.c.b16 %v330, %v329
        %v362 = vpack.c.b16 %v332, %v331
        %v363 = vpack.c.b16 %v334, %v333
        %v364 = vpack.c.b16 %v336, %v335
        %v365 = vpack.c.b16 %v338, %v337
        %v366 = vpack.c.b16 %v340, %v339
        %v367 = vpack.c.b16 %v342, %v341
        %v368 = vpack.c.b16 %v344, %v343
        %v369 = vpack.c.b16 %v346, %v345
        %v370 = vpack.c.b16 %v348, %v347
        %v371 = vpack.c.b16 %v350, %v349
        %v372 = vpack.c.b16 %v352, %v351
        %v373 = vpack.c.b16 %v354, %v353
        %v374 = vpack.c.b16 %v356, %v355
        %v375 = vpack.c.b16 %v358, %v357
        %v376 = vpack.c.b16 %v360, %v359
        %vm377 = vcmask 31744
        %v379 = vsel %vm377, %v361, 0
        %v382 = vsel %vm377, %v362, 0
        %v385 = vsel %vm377, %v363, 0
        %v388 = vsel %vm377, %v364, 0
        %v391 = vsel %vm377, %v365, 0
        %v394 = vsel %vm377, %v366, 0
        %v397 = vsel %vm377, %v367, 0
        %v400 = vsel %vm377, %v368, 0
        %v403 = vsel %vm377, %v369, 0
        %v406 = vsel %vm377, %v370, 0
        %v409 = vsel %vm377, %v371, 0
        %v412 = vsel %vm377, %v372, 0
        %v415 = vsel %vm377, %v373, 0
        %v418 = vsel %vm377, %v374, 0
        %v421 = vsel %vm377, %v375, 0
        %v424 = vsel %vm377, %v376, 0
        %vm426 = vcmask 1041408
        %v428 = vsel %vm426, %v296, 0
        %430 = vmatprep.subr.bf16.mxu0 0
        %431 = vmatpush1.bf16.msra.mxu0 %v428
        %432 = vmatprep.subr.bf16.mxu0 0
        %433 = vmatpush1.bf16.msra.mxu0 0
        %434 = vmatprep.subr.bf16.mxu0 0
        %435 = vmatpush1.bf16.msra.mxu0 0
        %436 = vmatprep.subr.bf16.mxu0 0
        %437 = vmatpush1.bf16.msra.mxu0 0
        %438 = vmatprep.subr.bf16.mxu0 0
        %439 = vmatpush1.bf16.msra.mxu0 0
        %440 = vmatprep.subr.bf16.mxu0 0
        %441 = vmatpush1.bf16.msra.mxu0 0
        %442 = vmatprep.subr.bf16.mxu0 0
        %443 = vmatpush1.bf16.msra.mxu0 0
        %444 = vmatprep.subr.bf16.mxu0 0
        %445 = vmatpush1.bf16.msra.mxu0 0
        %446 = vmatprep.subr.bf16.mxu0 0
        %447 = vmatpush1.bf16.msra.mxu0 0
        %448 = vmatprep.subr.bf16.mxu0 0
        %449 = vmatpush1.bf16.msra.mxu0 0
        %450 = vmatprep.subr.bf16.mxu0 0
        %451 = vmatpush1.bf16.msra.mxu0 0
        %452 = vmatprep.subr.bf16.mxu0 0
        %453 = vmatpush1.bf16.msra.mxu0 0
        %454 = vmatprep.subr.bf16.mxu0 0
        %455 = vmatpush1.bf16.msra.mxu0 0
        %456 = vmatprep.subr.bf16.mxu0 0
        %457 = vmatpush1.bf16.msra.mxu0 0
        %458 = vmatprep.subr.bf16.mxu0 0
        %459 = vmatpush1.bf16.msra.mxu0 0
        %460 = vmatprep.subr.bf16.mxu0 0
        %461 = vmatpush1.bf16.msra.mxu0 0
        %462 = vmatprep.mubr.bf16.mxu0 0
        %463 = vmatmul.mubr.bf16.gmra.mrb[0].mxu0 %v379
        %v464 = vpop.f32.mrb[0].mxu0
        %v465 = vadd.f32 0.0, %v464
        %v466 = vpop.f32.mrb[0].mxu0
        %v467 = vpop.f32.mrb[0].mxu0
        %v468 = vadd.f32 0.0, %v467
        %v469 = vpop.f32.mrb[0].mxu0
        %470 = vmatprep.mubr.bf16.mxu0 0
        %471 = vmatmul.mubr.bf16.gmra.mrb[0].mxu0 %v382
        %v472 = vpop.f32.mrb[0].mxu0
        %v473 = vadd.f32 0.0, %v472
        %v474 = vpop.f32.mrb[0].mxu0
        %v475 = vpop.f32.mrb[0].mxu0
        %v476 = vadd.f32 0.0, %v475
        %v477 = vpop.f32.mrb[0].mxu0
        %478 = vmatprep.mubr.bf16.mxu0 0
        %479 = vmatmul.mubr.bf16.gmra.mrb[0].mxu0 %v385
        %v480 = vpop.f32.mrb[0].mxu0
        %v481 = vadd.f32 0.0, %v480
        %v482 = vpop.f32.mrb[0].mxu0
        %v483 = vpop.f32.mrb[0].mxu0
        %v484 = vadd.f32 0.0, %v483
        %v485 = vpop.f32.mrb[0].mxu0
        %486 = vmatprep.mubr.bf16.mxu0 0
        %487 = vmatmul.mubr.bf16.gmra.mrb[0].mxu0 %v388
        %v488 = vpop.f32.mrb[0].mxu0
        %v489 = vadd.f32 0.0, %v488
        %v490 = vpop.f32.mrb[0].mxu0
        %v491 = vpop.f32.mrb[0].mxu0
        %v492 = vadd.f32 0.0, %v491
        %v493 = vpop.f32.mrb[0].mxu0
        %494 = vmatprep.mubr.bf16.mxu0 0
        %495 = vmatmul.mubr.bf16.gmra.mrb[0].mxu0 %v391
        %v496 = vpop.f32.mrb[0].mxu0
        %v497 = vadd.f32 0.0, %v496
        %v498 = vpop.f32.mrb[0].mxu0
        %v499 = vpop.f32.mrb[0].mxu0
        %v500 = vadd.f32 0.0, %v499
        %v501 = vpop.f32.mrb[0].mxu0
        %502 = vmatprep.mubr.bf16.mxu0 0
        %503 = vmatmul.mubr.bf16.gmra.mrb[0].mxu0 %v394
        %v504 = vpop.f32.mrb[0].mxu0
        %v505 = vadd.f32 0.0, %v504
        %v506 = vpop.f32.mrb[0].mxu0
        %v507 = vpop.f32.mrb[0].mxu0
        %v508 = vadd.f32 0.0, %v507
        %v509 = vpop.f32.mrb[0].mxu0
        %510 = vmatprep.mubr.bf16.mxu0 0
        %511 = vmatmul.mubr.bf16.gmra.mrb[0].mxu0 %v397
        %v512 = vpop.f32.mrb[0].mxu0
        %v513 = vadd.f32 0.0, %v512
        %v514 = vpop.f32.mrb[0].mxu0
        %v515 = vpop.f32.mrb[0].mxu0
        %v516 = vadd.f32 0.0, %v515
        %v517 = vpop.f32.mrb[0].mxu0
        %518 = vmatprep.mubr.bf16.mxu0 0
        %519 = vmatmul.mubr.bf16.gmra.mrb[0].mxu0 %v400
        %v520 = vpop.f32.mrb[0].mxu0
        %v521 = vadd.f32 0.0, %v520
        %v522 = vpop.f32.mrb[0].mxu0
        %v523 = vpop.f32.mrb[0].mxu0
        %v524 = vadd.f32 0.0, %v523
        %v525 = vpop.f32.mrb[0].mxu0
        %526 = vmatprep.mubr.bf16.mxu0 0
        %527 = vmatmul.mubr.bf16.gmra.mrb[0].mxu0 %v403
        %v528 = vpop.f32.mrb[0].mxu0
        %v529 = vadd.f32 0.0, %v528
        %v530 = vpop.f32.mrb[0].mxu0
        %v531 = vpop.f32.mrb[0].mxu0
        %v532 = vadd.f32 0.0, %v531
        %v533 = vpop.f32.mrb[0].mxu0
        %534 = vmatprep.mubr.bf16.mxu0 0
        %535 = vmatmul.mubr.bf16.gmra.mrb[0].mxu0 %v406
        %v536 = vpop.f32.mrb[0].mxu0
        %v537 = vadd.f32 0.0, %v536
        %v538 = vpop.f32.mrb[0].mxu0
        %v539 = vpop.f32.mrb[0].mxu0
        %v540 = vadd.f32 0.0, %v539
        %v541 = vpop.f32.mrb[0].mxu0
        %542 = vmatprep.mubr.bf16.mxu0 0
        %543 = vmatmul.mubr.bf16.gmra.mrb[0].mxu0 %v409
        %v544 = vpop.f32.mrb[0].mxu0
        %v545 = vadd.f32 0.0, %v544
        %v546 = vpop.f32.mrb[0].mxu0
        %v547 = vpop.f32.mrb[0].mxu0
        %v548 = vadd.f32 0.0, %v547
        %v549 = vpop.f32.mrb[0].mxu0
        %550 = vmatprep.mubr.bf16.mxu0 0
        %551 = vmatmul.mubr.bf16.gmra.mrb[0].mxu0 %v412
        %v552 = vpop.f32.mrb[0].mxu0
        %v553 = vadd.f32 0.0, %v552
        %v554 = vpop.f32.mrb[0].mxu0
        %v555 = vpop.f32.mrb[0].mxu0
        %v556 = vadd.f32 0.0, %v555
        %v557 = vpop.f32.mrb[0].mxu0
        %558 = vmatprep.mubr.bf16.mxu0 0
        %559 = vmatmul.mubr.bf16.gmra.mrb[0].mxu0 %v415
        %v560 = vpop.f32.mrb[0].mxu0
        %v561 = vadd.f32 0.0, %v560
        %v562 = vpop.f32.mrb[0].mxu0
        %v563 = vpop.f32.mrb[0].mxu0
        %v564 = vadd.f32 0.0, %v563
        %v565 = vpop.f32.mrb[0].mxu0
        %566 = vmatprep.mubr.bf16.mxu0 0
        %567 = vmatmul.mubr.bf16.gmra.mrb[0].mxu0 %v418
        %v568 = vpop.f32.mrb[0].mxu0
        %v569 = vadd.f32 0.0, %v568
        %v570 = vpop.f32.mrb[0].mxu0
        %v571 = vpop.f32.mrb[0].mxu0
        %v572 = vadd.f32 0.0, %v571
        %v573 = vpop.f32.mrb[0].mxu0
        %574 = vmatprep.mubr.bf16.mxu0 0
        %575 = vmatmul.mubr.bf16.gmra.mrb[0].mxu0 %v421
        %v576 = vpop.f32.mrb[0].mxu0
        %v577 = vadd.f32 0.0, %v576
        %v578 = vpop.f32.mrb[0].mxu0
        %v579 = vpop.f32.mrb[0].mxu0
        %v580 = vadd.f32 0.0, %v579
        %v581 = vpop.f32.mrb[0].mxu0
        %582 = vmatprep.mubr.bf16.mxu0 0
        %583 = vmatmul.mubr.bf16.gmra.mrb[0].mxu0 %v424
        %v584 = vpop.f32.mrb[0].mxu0
        %v585 = vadd.f32 0.0, %v584
        %v586 = vpop.f32.mrb[0].mxu0
        %v587 = vpop.f32.mrb[0].mxu0
        %v588 = vadd.f32 0.0, %v587
        %v589 = vpop.f32.mrb[0].mxu0
        %590 = vdwg.mxu0
        %p591 = scmp.eq.s32.totalorder %s24, 0
        // Predicated region
        $region41: #{vitdet_neck_conv.1} parent=39 // pred_check
          %p592 = pneg %p591
        $region42: #{vitdet_neck_conv.1} parent=39 // pred_check_branch
          %594 = sbr.rel (%p592) target = $region44
        $region43: #{vitdet_neck_conv.1} parent=39 // pred_region
          %v595 = vld [vmem:[%s2] sm:$0x1]
          %v597 = vlaneseq
          %v598 = vshrl.u32 %v597, 7
          %v599 = vsub.s32 0, %v598
          %v600 = vrot.slane %v595, %v599
          %v602 = vadd.f32 %v465, %v600
          %v603 = vadd.f32 %v468, %v600
          %v604 = vadd.f32 %v473, %v600
          %v605 = vadd.f32 %v476, %v600
          %v606 = vadd.f32 %v481, %v600
          %v607 = vadd.f32 %v484, %v600
          %v608 = vadd.f32 %v489, %v600
          %v609 = vadd.f32 %v492, %v600
          %v610 = vadd.f32 %v497, %v600
          %v611 = vadd.f32 %v500, %v600
          %v612 = vadd.f32 %v505, %v600
          %v613 = vadd.f32 %v508, %v600
          %v614 = vadd.f32 %v513, %v600
          %v615 = vadd.f32 %v516, %v600
          %v616 = vadd.f32 %v521, %v600
          %v617 = vadd.f32 %v524, %v600
          %v618 = vadd.f32 %v529, %v600
          %v619 = vadd.f32 %v532, %v600
          %v620 = vadd.f32 %v537, %v600
          %v621 = vadd.f32 %v540, %v600
          %v622 = vadd.f32 %v545, %v600
          %v623 = vadd.f32 %v548, %v600
          %v624 = vadd.f32 %v553, %v600
          %v625 = vadd.f32 %v556, %v600
          %v626 = vadd.f32 %v561, %v600
          %v627 = vadd.f32 %v564, %v600
          %v628 = vadd.f32 %v569, %v600
          %v629 = vadd.f32 %v572, %v600
          %v630 = vadd.f32 %v577, %v600
          %v631 = vadd.f32 %v580, %v600
          %v632 = vadd.f32 %v585, %v600
          %v633 = vadd.f32 %v588, %v600
          %vm634 = vcmask 261120
          %635 = vst.msk [vmem:[#allocation2] sm:$0xff] %vm634, %v602
          %636 = vst.msk [vmem:[#allocation2 + $0x8] sm:$0xff] %vm634, %v603
          %637 = vst.msk [vmem:[#allocation2 + $0x10] sm:$0xff] %vm634, %v604
          %638 = vst.msk [vmem:[#allocation2 + $0x18] sm:$0xff] %vm634, %v605
          %639 = vst.msk [vmem:[#allocation2 + $0x20] sm:$0xff] %vm634, %v606
          %640 = vst.msk [vmem:[#allocation2 + $0x28] sm:$0xff] %vm634, %v607
          %641 = vst.msk [vmem:[#allocation2 + $0x30] sm:$0xff] %vm634, %v608
          %642 = vst.msk [vmem:[#allocation2 + $0x38] sm:$0xff] %vm634, %v609
          %643 = vst.msk [vmem:[#allocation2 + $0x40] sm:$0xff] %vm634, %v610
          %644 = vst.msk [vmem:[#allocation2 + $0x48] sm:$0xff] %vm634, %v611
          %645 = vst.msk [vmem:[#allocation2 + $0x50] sm:$0xff] %vm634, %v612
          %646 = vst.msk [vmem:[#allocation2 + $0x58] sm:$0xff] %vm634, %v613
          %647 = vst.msk [vmem:[#allocation2 + $0x60] sm:$0xff] %vm634, %v614
          %648 = vst.msk [vmem:[#allocation2 + $0x68] sm:$0xff] %vm634, %v615
          %649 = vst.msk [vmem:[#allocation2 + $0x70] sm:$0xff] %vm634, %v616
          %650 = vst.msk [vmem:[#allocation2 + $0x78] sm:$0xff] %vm634, %v617
          %651 = vst.msk [vmem:[#allocation2 + $0x80] sm:$0xff] %vm634, %v618
          %652 = vst.msk [vmem:[#allocation2 + $0x88] sm:$0xff] %vm634, %v619
          %653 = vst.msk [vmem:[#allocation2 + $0x90] sm:$0xff] %vm634, %v620
          %654 = vst.msk [vmem:[#allocation2 + $0x98] sm:$0xff] %vm634, %v621
          %655 = vst.msk [vmem:[#allocation2 + $0xa0] sm:$0xff] %vm634, %v622
          %656 = vst.msk [vmem:[#allocation2 + $0xa8] sm:$0xff] %vm634, %v623
          %657 = vst.msk [vmem:[#allocation2 + $0xb0] sm:$0xff] %vm634, %v624
          %658 = vst.msk [vmem:[#allocation2 + $0xb8] sm:$0xff] %vm634, %v625
          %659 = vst.msk [vmem:[#allocation2 + $0xc0] sm:$0xff] %vm634, %v626
          %660 = vst.msk [vmem:[#allocation2 + $0xc8] sm:$0xff] %vm634, %v627
          %661 = vst.msk [vmem:[#allocation2 + $0xd0] sm:$0xff] %vm634, %v628
          %662 = vst.msk [vmem:[#allocation2 + $0xd8] sm:$0xff] %vm634, %v629
          %663 = vst.msk [vmem:[#allocation2 + $0xe0] sm:$0xff] %vm634, %v630
          %664 = vst.msk [vmem:[#allocation2 + $0xe8] sm:$0xff] %vm634, %v631
          %665 = vst.msk [vmem:[#allocation2 + $0xf0] sm:$0xff] %vm634, %v632
          %666 = vst.msk [vmem:[#allocation2 + $0xf8] sm:$0xff] %vm634, %v633
        $region44: #{vitdet_neck_conv.1} parent=39 // pred_fallthru
          _
        %p667 = scmp.gt.s32.totalorder %s24, 0
        // Predicated region
        $region45: #{vitdet_neck_conv.1} parent=39 // pred_check
          %p668 = pneg %p667
        $region46: #{vitdet_neck_conv.1} parent=39 // pred_check_branch
          %670 = sbr.rel (%p668) target = $region48
        $region47: #{vitdet_neck_conv.1} parent=39 // pred_region
          %v671 = vld [vmem:[#allocation2] sm:$0xff]
          %v672 = vld [vmem:[#allocation2 + $0x8] sm:$0xff]
          %v673 = vld [vmem:[#allocation2 + $0x10] sm:$0xff]
          %v674 = vld [vmem:[#allocation2 + $0x18] sm:$0xff]
          %v675 = vld [vmem:[#allocation2 + $0x20] sm:$0xff]
          %v676 = vld [vmem:[#allocation2 + $0x28] sm:$0xff]
          %v677 = vld [vmem:[#allocation2 + $0x30] sm:$0xff]
          %v678 = vld [vmem:[#allocation2 + $0x38] sm:$0xff]
          %v679 = vld [vmem:[#allocation2 + $0x40] sm:$0xff]
          %v680 = vld [vmem:[#allocation2 + $0x48] sm:$0xff]
          %v681 = vld [vmem:[#allocation2 + $0x50] sm:$0xff]
          %v682 = vld [vmem:[#allocation2 + $0x58] sm:$0xff]
          %v683 = vld [vmem:[#allocation2 + $0x60] sm:$0xff]
          %v684 = vld [vmem:[#allocation2 + $0x68] sm:$0xff]
          %v685 = vld [vmem:[#allocation2 + $0x70] sm:$0xff]
          %v686 = vld [vmem:[#allocation2 + $0x78] sm:$0xff]
          %v687 = vld [vmem:[#allocation2 + $0x80] sm:$0xff]
          %v688 = vld [vmem:[#allocation2 + $0x88] sm:$0xff]
          %v689 = vld [vmem:[#allocation2 + $0x90] sm:$0xff]
          %v690 = vld [vmem:[#allocation2 + $0x98] sm:$0xff]
          %v691 = vld [vmem:[#allocation2 + $0xa0] sm:$0xff]
          %v692 = vld [vmem:[#allocation2 + $0xa8] sm:$0xff]
          %v693 = vld [vmem:[#allocation2 + $0xb0] sm:$0xff]
          %v694 = vld [vmem:[#allocation2 + $0xb8] sm:$0xff]
          %v695 = vld [vmem:[#allocation2 + $0xc0] sm:$0xff]
          %v696 = vld [vmem:[#allocation2 + $0xc8] sm:$0xff]
          %v697 = vld [vmem:[#allocation2 + $0xd0] sm:$0xff]
          %v698 = vld [vmem:[#allocation2 + $0xd8] sm:$0xff]
          %v699 = vld [vmem:[#allocation2 + $0xe0] sm:$0xff]
          %v700 = vld [vmem:[#allocation2 + $0xe8] sm:$0xff]
          %v701 = vld [vmem:[#allocation2 + $0xf0] sm:$0xff]
          %v702 = vld [vmem:[#allocation2 + $0xf8] sm:$0xff]
          %v703 = vadd.f32 %v671, %v465
          %v704 = vadd.f32 %v672, %v468
          %v705 = vadd.f32 %v673, %v473
          %v706 = vadd.f32 %v674, %v476
          %v707 = vadd.f32 %v675, %v481
          %v708 = vadd.f32 %v676, %v484
          %v709 = vadd.f32 %v677, %v489
          %v710 = vadd.f32 %v678, %v492
          %v711 = vadd.f32 %v679, %v497
          %v712 = vadd.f32 %v680, %v500
          %v713 = vadd.f32 %v681, %v505
          %v714 = vadd.f32 %v682, %v508
          %v715 = vadd.f32 %v683, %v513
          %v716 = vadd.f32 %v684, %v516
          %v717 = vadd.f32 %v685, %v521
          %v718 = vadd.f32 %v686, %v524
          %v719 = vadd.f32 %v687, %v529
          %v720 = vadd.f32 %v688, %v532
          %v721 = vadd.f32 %v689, %v537
          %v722 = vadd.f32 %v690, %v540
          %v723 = vadd.f32 %v691, %v545
          %v724 = vadd.f32 %v692, %v548
          %v725 = vadd.f32 %v693, %v553
          %v726 = vadd.f32 %v694, %v556
          %v727 = vadd.f32 %v695, %v561
          %v728 = vadd.f32 %v696, %v564
          %v729 = vadd.f32 %v697, %v569
          %v730 = vadd.f32 %v698, %v572
          %v731 = vadd.f32 %v699, %v577
          %v732 = vadd.f32 %v700, %v580
          %v733 = vadd.f32 %v701, %v585
          %v734 = vadd.f32 %v702, %v588
          %vm735 = vcmask 261120
          %736 = vst.msk [vmem:[#allocation2] sm:$0xff] %vm735, %v703
          %737 = vst.msk [vmem:[#allocation2 + $0x8] sm:$0xff] %vm735, %v704
          %738 = vst.msk [vmem:[#allocation2 + $0x10] sm:$0xff] %vm735, %v705
          %739 = vst.msk [vmem:[#allocation2 + $0x18] sm:$0xff] %vm735, %v706
          %740 = vst.msk [vmem:[#allocation2 + $0x20] sm:$0xff] %vm735, %v707
          %741 = vst.msk [vmem:[#allocation2 + $0x28] sm:$0xff] %vm735, %v708
          %742 = vst.msk [vmem:[#allocation2 + $0x30] sm:$0xff] %vm735, %v709
          %743 = vst.msk [vmem:[#allocation2 + $0x38] sm:$0xff] %vm735, %v710
          %744 = vst.msk [vmem:[#allocation2 + $0x40] sm:$0xff] %vm735, %v711
          %745 = vst.msk [vmem:[#allocation2 + $0x48] sm:$0xff] %vm735, %v712
          %746 = vst.msk [vmem:[#allocation2 + $0x50] sm:$0xff] %vm735, %v713
          %747 = vst.msk [vmem:[#allocation2 + $0x58] sm:$0xff] %vm735, %v714
          %748 = vst.msk [vmem:[#allocation2 + $0x60] sm:$0xff] %vm735, %v715
          %749 = vst.msk [vmem:[#allocation2 + $0x68] sm:$0xff] %vm735, %v716
          %750 = vst.msk [vmem:[#allocation2 + $0x70] sm:$0xff] %vm735, %v717
          %751 = vst.msk [vmem:[#allocation2 + $0x78] sm:$0xff] %vm735, %v718
          %752 = vst.msk [vmem:[#allocation2 + $0x80] sm:$0xff] %vm735, %v719
          %753 = vst.msk [vmem:[#allocation2 + $0x88] sm:$0xff] %vm735, %v720
          %754 = vst.msk [vmem:[#allocation2 + $0x90] sm:$0xff] %vm735, %v721
          %755 = vst.msk [vmem:[#allocation2 + $0x98] sm:$0xff] %vm735, %v722
          %756 = vst.msk [vmem:[#allocation2 + $0xa0] sm:$0xff] %vm735, %v723
          %757 = vst.msk [vmem:[#allocation2 + $0xa8] sm:$0xff] %vm735, %v724
          %758 = vst.msk [vmem:[#allocation2 + $0xb0] sm:$0xff] %vm735, %v725
          %759 = vst.msk [vmem:[#allocation2 + $0xb8] sm:$0xff] %vm735, %v726
          %760 = vst.msk [vmem:[#allocation2 + $0xc0] sm:$0xff] %vm735, %v727
          %761 = vst.msk [vmem:[#allocation2 + $0xc8] sm:$0xff] %vm735, %v728
          %762 = vst.msk [vmem:[#allocation2 + $0xd0] sm:$0xff] %vm735, %v729
          %763 = vst.msk [vmem:[#allocation2 + $0xd8] sm:$0xff] %vm735, %v730
          %764 = vst.msk [vmem:[#allocation2 + $0xe0] sm:$0xff] %vm735, %v731
          %765 = vst.msk [vmem:[#allocation2 + $0xe8] sm:$0xff] %vm735, %v732
          %766 = vst.msk [vmem:[#allocation2 + $0xf0] sm:$0xff] %vm735, %v733
          %767 = vst.msk [vmem:[#allocation2 + $0xf8] sm:$0xff] %vm735, %v734
        $region48: #{vitdet_neck_conv.1} parent=39 // pred_fallthru
          _
        // Predicated region
        $region49: #{vitdet_neck_conv.1} parent=39 // pred_check
          %p768 = pneg %p591
        $region50: #{vitdet_neck_conv.1} parent=39 // pred_check_branch
          %770 = sbr.rel (%p768) target = $region52
        $region51: #{vitdet_neck_conv.1} parent=39 // pred_region
          %v771 = vld [vmem:[#allocation2] sm:$0xff]
          %v772 = vld [vmem:[#allocation2 + $0x8] sm:$0xff]
          %v773 = vld [vmem:[#allocation2 + $0x10] sm:$0xff]
          %v774 = vld [vmem:[#allocation2 + $0x18] sm:$0xff]
          %v775 = vld [vmem:[#allocation2 + $0x20] sm:$0xff]
          %v776 = vld [vmem:[#allocation2 + $0x28] sm:$0xff]
          %v777 = vld [vmem:[#allocation2 + $0x30] sm:$0xff]
          %v778 = vld [vmem:[#allocation2 + $0x38] sm:$0xff]
          %v779 = vld [vmem:[#allocation2 + $0x40] sm:$0xff]
          %v780 = vld [vmem:[#allocation2 + $0x48] sm:$0xff]
          %v781 = vld [vmem:[#allocation2 + $0x50] sm:$0xff]
          %v782 = vld [vmem:[#allocation2 + $0x58] sm:$0xff]
          %v783 = vld [vmem:[#allocation2 + $0x60] sm:$0xff]
          %v784 = vld [vmem:[#allocation2 + $0x68] sm:$0xff]
          %v785 = vld [vmem:[#allocation2 + $0x70] sm:$0xff]
          %v786 = vld [vmem:[#allocation2 + $0x78] sm:$0xff]
          %v787 = vld [vmem:[#allocation2 + $0x80] sm:$0xff]
          %v788 = vld [vmem:[#allocation2 + $0x88] sm:$0xff]
          %v789 = vld [vmem:[#allocation2 + $0x90] sm:$0xff]
          %v790 = vld [vmem:[#allocation2 + $0x98] sm:$0xff]
          %v791 = vld [vmem:[#allocation2 + $0xa0] sm:$0xff]
          %v792 = vld [vmem:[#allocation2 + $0xa8] sm:$0xff]
          %v793 = vld [vmem:[#allocation2 + $0xb0] sm:$0xff]
          %v794 = vld [vmem:[#allocation2 + $0xb8] sm:$0xff]
          %v795 = vld [vmem:[#allocation2 + $0xc0] sm:$0xff]
          %v796 = vld [vmem:[#allocation2 + $0xc8] sm:$0xff]
          %v797 = vld [vmem:[#allocation2 + $0xd0] sm:$0xff]
          %v798 = vld [vmem:[#allocation2 + $0xd8] sm:$0xff]
          %v799 = vld [vmem:[#allocation2 + $0xe0] sm:$0xff]
          %v800 = vld [vmem:[#allocation2 + $0xe8] sm:$0xff]
          %v801 = vld [vmem:[#allocation2 + $0xf0] sm:$0xff]
          %v802 = vld [vmem:[#allocation2 + $0xf8] sm:$0xff]
          %v803 = vpack.c.bf16 %v772, %v771
          %v804 = vpack.c.bf16 %v774, %v773
          %v805 = vpack.c.bf16 %v776, %v775
          %v806 = vpack.c.bf16 %v778, %v777
          %v807 = vpack.c.bf16 %v780, %v779
          %v808 = vpack.c.bf16 %v782, %v781
          %v809 = vpack.c.bf16 %v784, %v783
          %v810 = vpack.c.bf16 %v786, %v785
          %v811 = vpack.c.bf16 %v788, %v787
          %v812 = vpack.c.bf16 %v790, %v789
          %v813 = vpack.c.bf16 %v792, %v791
          %v814 = vpack.c.bf16 %v794, %v793
          %v815 = vpack.c.bf16 %v796, %v795
          %v816 = vpack.c.bf16 %v798, %v797
          %v817 = vpack.c.bf16 %v800, %v799
          %v818 = vpack.c.bf16 %v802, %v801
          %vm819 = vcmask 785408
          %820 = vst.msk [vmem:[#allocation3] sm:$0xff] %vm819, 0
          %s821 = scalar_lea.vmem [#allocation3], 136
          %822 = vst.msk [vmem:[%s821] sm:$0xff] %vm819, 0
          %v824 = vshrl.u32 %v803, 16
          %v826 = vrot.slane %v824, 7
          %v827 = vshll.u32 %v803, 16
          %v829 = vor.u32 %v826, %v827
          %v831 = vshrl.u32 %v804, 16
          %v833 = vrot.slane %v831, 7
          %v834 = vshll.u32 %v804, 16
          %v836 = vor.u32 %v833, %v834
          %v838 = vshrl.u32 %v805, 16
          %v840 = vrot.slane %v838, 7
          %v841 = vshll.u32 %v805, 16
          %v843 = vor.u32 %v840, %v841
          %v845 = vshrl.u32 %v806, 16
          %v847 = vrot.slane %v845, 7
          %v848 = vshll.u32 %v806, 16
          %v850 = vor.u32 %v847, %v848
          %v852 = vshrl.u32 %v807, 16
          %v854 = vrot.slane %v852, 7
          %v855 = vshll.u32 %v807, 16
          %v857 = vor.u32 %v854, %v855
          %v859 = vshrl.u32 %v808, 16
          %v861 = vrot.slane %v859, 7
          %v862 = vshll.u32 %v808, 16
          %v864 = vor.u32 %v861, %v862
          %v866 = vshrl.u32 %v809, 16
          %v868 = vrot.slane %v866, 7
          %v869 = vshll.u32 %v809, 16
          %v871 = vor.u32 %v868, %v869
          %v873 = vshrl.u32 %v810, 16
          %v875 = vrot.slane %v873, 7
          %v876 = vshll.u32 %v810, 16
          %v878 = vor.u32 %v875, %v876
          %v880 = vshrl.u32 %v811, 16
          %v882 = vrot.slane %v880, 7
          %v883 = vshll.u32 %v811, 16
          %v885 = vor.u32 %v882, %v883
          %v887 = vshrl.u32 %v812, 16
          %v889 = vrot.slane %v887, 7
          %v890 = vshll.u32 %v812, 16
          %v892 = vor.u32 %v889, %v890
          %v894 = vshrl.u32 %v813, 16
          %v896 = vrot.slane %v894, 7
          %v897 = vshll.u32 %v813, 16
          %v899 = vor.u32 %v896, %v897
          %v901 = vshrl.u32 %v814, 16
          %v903 = vrot.slane %v901, 7
          %v904 = vshll.u32 %v814, 16
          %v906 = vor.u32 %v903, %v904
          %v908 = vshrl.u32 %v815, 16
          %v910 = vrot.slane %v908, 7
          %v911 = vshll.u32 %v815, 16
          %v913 = vor.u32 %v910, %v911
          %v915 = vshrl.u32 %v816, 16
          %v917 = vrot.slane %v915, 7
          %v918 = vshll.u32 %v816, 16
          %v920 = vor.u32 %v917, %v918
          %v922 = vshrl.u32 %v817, 16
          %v924 = vrot.slane %v922, 7
          %v925 = vshll.u32 %v817, 16
          %v927 = vor.u32 %v924, %v925
          %v929 = vshrl.u32 %v818, 16
          %v931 = vrot.slane %v929, 7
          %v932 = vshll.u32 %v818, 16
          %v934 = vor.u32 %v931, %v932
          %vm951 = vcmask 1040384
          %vm952 = vsmask.f32 256
          %vm953 = vmand %vm951, %vm952
          %v954 = vsel %vm953, 0, %v829
          %v955 = vsel %vm953, 0, %v836
          %v956 = vsel %vm953, 0, %v843
          %v957 = vsel %vm953, 0, %v850
          %v958 = vsel %vm953, 0, %v857
          %v959 = vsel %vm953, 0, %v864
          %v960 = vsel %vm953, 0, %v871
          %v961 = vsel %vm953, 0, %v878
          %v962 = vsel %vm953, 0, %v885
          %v963 = vsel %vm953, 0, %v892
          %v964 = vsel %vm953, 0, %v899
          %v965 = vsel %vm953, 0, %v906
          %v966 = vsel %vm953, 0, %v913
          %v967 = vsel %vm953, 0, %v920
          %v968 = vsel %vm953, 0, %v927
          %v969 = vsel %vm953, 0, %v934
          %s970 = scalar_lea.vmem [#allocation3], 8
          %vm971 = vcmask 261120
          %972 = vst.msk [vmem:[%s970] sm:$0xff] %vm971, %v954
          %973 = vst.msk [vmem:[%s970 + $0x8] sm:$0xff] %vm971, %v955
          %974 = vst.msk [vmem:[%s970 + $0x10] sm:$0xff] %vm971, %v956
          %975 = vst.msk [vmem:[%s970 + $0x18] sm:$0xff] %vm971, %v957
          %976 = vst.msk [vmem:[%s970 + $0x20] sm:$0xff] %vm971, %v958
          %977 = vst.msk [vmem:[%s970 + $0x28] sm:$0xff] %vm971, %v959
          %978 = vst.msk [vmem:[%s970 + $0x30] sm:$0xff] %vm971, %v960
          %979 = vst.msk [vmem:[%s970 + $0x38] sm:$0xff] %vm971, %v961
          %980 = vst.msk [vmem:[%s970 + $0x40] sm:$0xff] %vm971, %v962
          %981 = vst.msk [vmem:[%s970 + $0x48] sm:$0xff] %vm971, %v963
          %982 = vst.msk [vmem:[%s970 + $0x50] sm:$0xff] %vm971, %v964
          %983 = vst.msk [vmem:[%s970 + $0x58] sm:$0xff] %vm971, %v965
          %984 = vst.msk [vmem:[%s970 + $0x60] sm:$0xff] %vm971, %v966
          %985 = vst.msk [vmem:[%s970 + $0x68] sm:$0xff] %vm971, %v967
          %986 = vst.msk [vmem:[%s970 + $0x70] sm:$0xff] %vm971, %v968
          %987 = vst.msk [vmem:[%s970 + $0x78] sm:$0xff] %vm971, %v969
          %1004 = vrot.lane.b32.xlu0 %v803, 32
          %v1005 = vpop.permute.xlu0 %1004
          %1006 = vrot.lane.b32.xlu0 %v804, 32
          %v1007 = vpop.permute.xlu0 %1006
          %1008 = vrot.lane.b32.xlu0 %v805, 32
          %v1009 = vpop.permute.xlu0 %1008
          %1010 = vrot.lane.b32.xlu0 %v806, 32
          %v1011 = vpop.permute.xlu0 %1010
          %1012 = vrot.lane.b32.xlu0 %v807, 32
          %v1013 = vpop.permute.xlu0 %1012
          %1014 = vrot.lane.b32.xlu0 %v808, 32
          %v1015 = vpop.permute.xlu0 %1014
          %1016 = vrot.lane.b32.xlu0 %v809, 32
          %v1017 = vpop.permute.xlu0 %1016
          %1018 = vrot.lane.b32.xlu0 %v810, 32
          %v1019 = vpop.permute.xlu0 %1018
          %1020 = vrot.lane.b32.xlu0 %v811, 32
          %v1021 = vpop.permute.xlu0 %1020
          %1022 = vrot.lane.b32.xlu0 %v812, 32
          %v1023 = vpop.permute.xlu0 %1022
          %1024 = vrot.lane.b32.xlu0 %v813, 32
          %v1025 = vpop.permute.xlu0 %1024
          %1026 = vrot.lane.b32.xlu0 %v814, 32
          %v1027 = vpop.permute.xlu0 %1026
          %1028 = vrot.lane.b32.xlu0 %v815, 32
          %v1029 = vpop.permute.xlu0 %1028
          %1030 = vrot.lane.b32.xlu0 %v816, 32
          %v1031 = vpop.permute.xlu0 %1030
          %1032 = vrot.lane.b32.xlu0 %v817, 32
          %v1033 = vpop.permute.xlu0 %1032
          %1034 = vrot.lane.b32.xlu0 %v818, 32
          %v1035 = vpop.permute.xlu0 %1034
          %vm1052 = vcmask 523520
          %1053 = vst.msk [vmem:[%s970] sm:$0xff] %vm1052, %v1005
          %1054 = vst.msk [vmem:[%s970 + $0x8] sm:$0xff] %vm1052, %v1007
          %1055 = vst.msk [vmem:[%s970 + $0x10] sm:$0xff] %vm1052, %v1009
          %1056 = vst.msk [vmem:[%s970 + $0x18] sm:$0xff] %vm1052, %v1011
          %1057 = vst.msk [vmem:[%s970 + $0x20] sm:$0xff] %vm1052, %v1013
          %1058 = vst.msk [vmem:[%s970 + $0x28] sm:$0xff] %vm1052, %v1015
          %1059 = vst.msk [vmem:[%s970 + $0x30] sm:$0xff] %vm1052, %v1017
          %1060 = vst.msk [vmem:[%s970 + $0x38] sm:$0xff] %vm1052, %v1019
          %1061 = vst.msk [vmem:[%s970 + $0x40] sm:$0xff] %vm1052, %v1021
          %1062 = vst.msk [vmem:[%s970 + $0x48] sm:$0xff] %vm1052, %v1023
          %1063 = vst.msk [vmem:[%s970 + $0x50] sm:$0xff] %vm1052, %v1025
          %1064 = vst.msk [vmem:[%s970 + $0x58] sm:$0xff] %vm1052, %v1027
          %1065 = vst.msk [vmem:[%s970 + $0x60] sm:$0xff] %vm1052, %v1029
          %1066 = vst.msk [vmem:[%s970 + $0x68] sm:$0xff] %vm1052, %v1031
          %1067 = vst.msk [vmem:[%s970 + $0x70] sm:$0xff] %vm1052, %v1033
          %1068 = vst.msk [vmem:[%s970 + $0x78] sm:$0xff] %vm1052, %v1035
          %v1069 = vrot.slane %v827, 1
          %v1070 = vor.u32 %v824, %v1069
          %v1071 = vrot.slane %v834, 1
          %v1072 = vor.u32 %v831, %v1071
          %v1073 = vrot.slane %v841, 1
          %v1074 = vor.u32 %v838, %v1073
          %v1075 = vrot.slane %v848, 1
          %v1076 = vor.u32 %v845, %v1075
          %v1077 = vrot.slane %v855, 1
          %v1078 = vor.u32 %v852, %v1077
          %v1079 = vrot.slane %v862, 1
          %v1080 = vor.u32 %v859, %v1079
          %v1081 = vrot.slane %v869, 1
          %v1082 = vor.u32 %v866, %v1081
          %v1083 = vrot.slane %v876, 1
          %v1084 = vor.u32 %v873, %v1083
          %v1085 = vrot.slane %v883, 1
          %v1086 = vor.u32 %v880, %v1085
          %v1087 = vrot.slane %v890, 1
          %v1088 = vor.u32 %v887, %v1087
          %v1089 = vrot.slane %v897, 1
          %v1090 = vor.u32 %v894, %v1089
          %v1091 = vrot.slane %v904, 1
          %v1092 = vor.u32 %v901, %v1091
          %v1093 = vrot.slane %v911, 1
          %v1094 = vor.u32 %v908, %v1093
          %v1095 = vrot.slane %v918, 1
          %v1096 = vor.u32 %v915, %v1095
          %v1097 = vrot.slane %v925, 1
          %v1098 = vor.u32 %v922, %v1097
          %v1099 = vrot.slane %v932, 1
          %v1100 = vor.u32 %v929, %v1099
          %vm1117 = vcmask 1047552
          %vm1118 = vsmask.f32 7424
          %vm1119 = vmand %vm1117, %vm1118
          %v1120 = vsel %vm1119, %v1070, 0
          %v1121 = vsel %vm1119, %v1072, 0
          %v1122 = vsel %vm1119, %v1074, 0
          %v1123 = vsel %vm1119, %v1076, 0
          %v1124 = vsel %vm1119, %v1078, 0
          %v1125 = vsel %vm1119, %v1080, 0
          %v1126 = vsel %vm1119, %v1082, 0
          %v1127 = vsel %vm1119, %v1084, 0
          %v1128 = vsel %vm1119, %v1086, 0
          %v1129 = vsel %vm1119, %v1088, 0
          %v1130 = vsel %vm1119, %v1090, 0
          %v1131 = vsel %vm1119, %v1092, 0
          %v1132 = vsel %vm1119, %v1094, 0
          %v1133 = vsel %vm1119, %v1096, 0
          %v1134 = vsel %vm1119, %v1098, 0
          %v1135 = vsel %vm1119, %v1100, 0
          %1152 = vrot.lane.b32.xlu0 %v1120, 64
          %v1153 = vpop.permute.xlu0 %1152
          %1154 = vrot.lane.b32.xlu0 %v1121, 64
          %v1155 = vpop.permute.xlu0 %1154
          %1156 = vrot.lane.b32.xlu0 %v1122, 64
          %v1157 = vpop.permute.xlu0 %1156
          %1158 = vrot.lane.b32.xlu0 %v1123, 64
          %v1159 = vpop.permute.xlu0 %1158
          %1160 = vrot.lane.b32.xlu0 %v1124, 64
          %v1161 = vpop.permute.xlu0 %1160
          %1162 = vrot.lane.b32.xlu0 %v1125, 64
          %v1163 = vpop.permute.xlu0 %1162
          %1164 = vrot.lane.b32.xlu0 %v1126, 64
          %v1165 = vpop.permute.xlu0 %1164
          %1166 = vrot.lane.b32.xlu0 %v1127, 64
          %v1167 = vpop.permute.xlu0 %1166
          %1168 = vrot.lane.b32.xlu0 %v1128, 64
          %v1169 = vpop.permute.xlu0 %1168
          %1170 = vrot.lane.b32.xlu0 %v1129, 64
          %v1171 = vpop.permute.xlu0 %1170
          %1172 = vrot.lane.b32.xlu0 %v1130, 64
          %v1173 = vpop.permute.xlu0 %1172
          %1174 = vrot.lane.b32.xlu0 %v1131, 64
          %v1175 = vpop.permute.xlu0 %1174
          %1176 = vrot.lane.b32.xlu0 %v1132, 64
          %v1177 = vpop.permute.xlu0 %1176
          %1178 = vrot.lane.b32.xlu0 %v1133, 64
          %v1179 = vpop.permute.xlu0 %1178
          %1180 = vrot.lane.b32.xlu0 %v1134, 64
          %v1181 = vpop.permute.xlu0 %1180
          %1182 = vrot.lane.b32.xlu0 %v1135, 64
          %v1183 = vpop.permute.xlu0 %1182
          %vm1200 = vcmask 785920
          %1201 = vst.msk [vmem:[%s970] sm:$0xff] %vm1200, %v1153
          %1202 = vst.msk [vmem:[%s970 + $0x8] sm:$0xff] %vm1200, %v1155
          %1203 = vst.msk [vmem:[%s970 + $0x10] sm:$0xff] %vm1200, %v1157
          %1204 = vst.msk [vmem:[%s970 + $0x18] sm:$0xff] %vm1200, %v1159
          %1205 = vst.msk [vmem:[%s970 + $0x20] sm:$0xff] %vm1200, %v1161
          %1206 = vst.msk [vmem:[%s970 + $0x28] sm:$0xff] %vm1200, %v1163
          %1207 = vst.msk [vmem:[%s970 + $0x30] sm:$0xff] %vm1200, %v1165
          %1208 = vst.msk [vmem:[%s970 + $0x38] sm:$0xff] %vm1200, %v1167
          %1209 = vst.msk [vmem:[%s970 + $0x40] sm:$0xff] %vm1200, %v1169
          %1210 = vst.msk [vmem:[%s970 + $0x48] sm:$0xff] %vm1200, %v1171
          %1211 = vst.msk [vmem:[%s970 + $0x50] sm:$0xff] %vm1200, %v1173
          %1212 = vst.msk [vmem:[%s970 + $0x58] sm:$0xff] %vm1200, %v1175
          %1213 = vst.msk [vmem:[%s970 + $0x60] sm:$0xff] %vm1200, %v1177
          %1214 = vst.msk [vmem:[%s970 + $0x68] sm:$0xff] %vm1200, %v1179
          %1215 = vst.msk [vmem:[%s970 + $0x70] sm:$0xff] %vm1200, %v1181
          %1216 = vst.msk [vmem:[%s970 + $0x78] sm:$0xff] %vm1200, %v1183
          %v1217 = vld [vmem:[#allocation3] sm:$0xff]
          %v1218 = vld [vmem:[#allocation3 + $0x8] sm:$0xff]
          %v1219 = vld [vmem:[#allocation3 + $0x10] sm:$0xff]
          %v1220 = vld [vmem:[#allocation3 + $0x18] sm:$0xff]
          %v1221 = vld [vmem:[#allocation3 + $0x20] sm:$0xff]
          %v1222 = vld [vmem:[#allocation3 + $0x28] sm:$0xff]
          %v1223 = vld [vmem:[#allocation3 + $0x30] sm:$0xff]
          %v1224 = vld [vmem:[#allocation3 + $0x38] sm:$0xff]
          %v1225 = vld [vmem:[#allocation3 + $0x40] sm:$0xff]
          %v1226 = vld [vmem:[#allocation3 + $0x48] sm:$0xff]
          %v1227 = vld [vmem:[#allocation3 + $0x50] sm:$0xff]
          %v1228 = vld [vmem:[#allocation3 + $0x58] sm:$0xff]
          %v1229 = vld [vmem:[#allocation3 + $0x60] sm:$0xff]
          %v1230 = vld [vmem:[#allocation3 + $0x68] sm:$0xff]
          %v1231 = vld [vmem:[#allocation3 + $0x70] sm:$0xff]
          %v1232 = vld [vmem:[#allocation3 + $0x78] sm:$0xff]
          %v1233 = vld [vmem:[%s3] sm:$0xf]
          %v1234 = vld [vmem:[%s3 + $0x4] sm:$0xf]
          %v1235 = vld [vmem:[%s3 + $0x8] sm:$0xf]
          %v1236 = vld [vmem:[%s3 + $0xc] sm:$0xf]
          %v1237 = vld [vmem:[%s3 + $0x10] sm:$0xf]
          %v1238 = vld [vmem:[%s3 + $0x14] sm:$0xf]
          %v1239 = vld [vmem:[%s3 + $0x18] sm:$0xf]
          %v1240 = vld [vmem:[%s3 + $0x1c] sm:$0xf]
          %v1241 = vld [vmem:[%s3 + $0x20] sm:$0xf]
          %v1242 = vld [vmem:[%s3 + $0x24] sm:$0xf]
          %v1243 = vld [vmem:[%s3 + $0x28] sm:$0xf]
          %v1244 = vld [vmem:[%s3 + $0x2c] sm:$0xf]
          %v1257 = vunpack.c.l.b16 %v1233
          %v1258 = vunpack.c.l.b16 %v1234
          %v1259 = vunpack.c.l.b16 %v1235
          %v1260 = vunpack.c.l.b16 %v1236
          %v1261 = vunpack.c.l.b16 %v1237
          %v1262 = vunpack.c.l.b16 %v1238
          %v1263 = vunpack.c.l.b16 %v1239
          %v1264 = vunpack.c.l.b16 %v1240
          %v1265 = vunpack.c.l.b16 %v1241
          %v1266 = vunpack.c.l.b16 %v1242
          %v1267 = vunpack.c.l.b16 %v1243
          %v1268 = vunpack.c.l.b16 %v1244
          %v1269 = vpack.c.b16 %v1258, %v1257
          %v1270 = vpack.c.b16 %v1260, %v1259
          %v1271 = vpack.c.b16 %v1262, %v1261
          %v1272 = vpack.c.b16 %v1264, %v1263
          %v1273 = vpack.c.b16 %v1266, %v1265
          %v1274 = vpack.c.b16 %v1268, %v1267
          %v1282 = vsel %vm819, %v1217, 0
          %v1285 = vsel %vm819, %v1218, 0
          %v1288 = vsel %vm819, %v1219, 0
          %v1291 = vsel %vm819, %v1220, 0
          %v1294 = vsel %vm819, %v1221, 0
          %v1297 = vsel %vm819, %v1222, 0
          %v1300 = vsel %vm819, %v1223, 0
          %v1303 = vsel %vm819, %v1224, 0
          %v1306 = vsel %vm819, %v1225, 0
          %v1309 = vsel %vm819, %v1226, 0
          %v1312 = vsel %vm819, %v1227, 0
          %v1315 = vsel %vm819, %v1228, 0
          %v1318 = vsel %vm819, %v1229, 0
          %v1321 = vsel %vm819, %v1230, 0
          %v1324 = vsel %vm819, %v1231, 0
          %v1327 = vsel %vm819, %v1232, 0
          %1329 = vmatprep.subr.bf16.mxu0 0
          %1330 = vmatpush1.bf16.msra.mxu0 %v1269
          %1331 = vmatprep.subr.bf16.mxu0 0
          %1332 = vmatpush1.bf16.msra.mxu0 %v1270
          %1333 = vmatprep.subr.bf16.mxu0 0
          %1334 = vmatpush1.bf16.msra.mxu0 %v1271
          %1335 = vmatprep.subr.bf16.mxu0 0
          %1336 = vmatpush1.bf16.msra.mxu0 %v1272
          %1337 = vmatprep.subr.bf16.mxu0 0
          %1338 = vmatpush1.bf16.msra.mxu0 %v1273
          %1339 = vmatprep.subr.bf16.mxu0 0
          %1340 = vmatpush1.bf16.msra.mxu0 %v1274
          %1341 = vmatprep.subr.bf16.mxu0 0
          %1342 = vmatpush1.bf16.msra.mxu0 0
          %1343 = vmatprep.subr.bf16.mxu0 0
          %1344 = vmatpush1.bf16.msra.mxu0 0
          %1345 = vmatprep.subr.bf16.mxu0 0
          %1346 = vmatpush1.bf16.msra.mxu0 0
          %1347 = vmatprep.subr.bf16.mxu0 0
          %1348 = vmatpush1.bf16.msra.mxu0 0
          %1349 = vmatprep.subr.bf16.mxu0 0
          %1350 = vmatpush1.bf16.msra.mxu0 0
          %1351 = vmatprep.subr.bf16.mxu0 0
          %1352 = vmatpush1.bf16.msra.mxu0 0
          %1353 = vmatprep.subr.bf16.mxu0 0
          %1354 = vmatpush1.bf16.msra.mxu0 0
          %1355 = vmatprep.subr.bf16.mxu0 0
          %1356 = vmatpush1.bf16.msra.mxu0 0
          %1357 = vmatprep.subr.bf16.mxu0 0
          %1358 = vmatpush1.bf16.msra.mxu0 0
          %1359 = vmatprep.subr.bf16.mxu0 0
          %1360 = vmatpush1.bf16.msra.mxu0 0
          %1361 = vmatprep.mubr.bf16.mxu0 0
          %1362 = vmatmul.mubr.bf16.gmra.mrb[0].mxu0 %v1282
          %v1363 = vpop.f32.mrb[0].mxu0
          %v1364 = vadd.f32 0.0, %v1363
          %v1365 = vpop.f32.mrb[0].mxu0
          %v1366 = vpop.f32.mrb[0].mxu0
          %v1367 = vadd.f32 0.0, %v1366
          %v1368 = vpop.f32.mrb[0].mxu0
          %1369 = vmatprep.mubr.bf16.mxu0 0
          %1370 = vmatmul.mubr.bf16.gmra.mrb[0].mxu0 %v1285
          %v1371 = vpop.f32.mrb[0].mxu0
          %v1372 = vadd.f32 0.0, %v1371
          %v1373 = vpop.f32.mrb[0].mxu0
          %v1374 = vpop.f32.mrb[0].mxu0
          %v1375 = vadd.f32 0.0, %v1374
          %v1376 = vpop.f32.mrb[0].mxu0
          %1377 = vmatprep.mubr.bf16.mxu0 0
          %1378 = vmatmul.mubr.bf16.gmra.mrb[0].mxu0 %v1288
          %v1379 = vpop.f32.mrb[0].mxu0
          %v1380 = vadd.f32 0.0, %v1379
          %v1381 = vpop.f32.mrb[0].mxu0
          %v1382 = vpop.f32.mrb[0].mxu0
          %v1383 = vadd.f32 0.0, %v1382
          %v1384 = vpop.f32.mrb[0].mxu0
          %1385 = vmatprep.mubr.bf16.mxu0 0
          %1386 = vmatmul.mubr.bf16.gmra.mrb[0].mxu0 %v1291
          %v1387 = vpop.f32.mrb[0].mxu0
          %v1388 = vadd.f32 0.0, %v1387
          %v1389 = vpop.f32.mrb[0].mxu0
          %v1390 = vpop.f32.mrb[0].mxu0
          %v1391 = vadd.f32 0.0, %v1390
          %v1392 = vpop.f32.mrb[0].mxu0
          %1393 = vmatprep.mubr.bf16.mxu0 0
          %1394 = vmatmul.mubr.bf16.gmra.mrb[0].mxu0 %v1294
          %v1395 = vpop.f32.mrb[0].mxu0
          %v1396 = vadd.f32 0.0, %v1395
          %v1397 = vpop.f32.mrb[0].mxu0
          %v1398 = vpop.f32.mrb[0].mxu0
          %v1399 = vadd.f32 0.0, %v1398
          %v1400 = vpop.f32.mrb[0].mxu0
          %1401 = vmatprep.mubr.bf16.mxu0 0
          %1402 = vmatmul.mubr.bf16.gmra.mrb[0].mxu0 %v1297
          %v1403 = vpop.f32.mrb[0].mxu0
          %v1404 = vadd.f32 0.0, %v1403
          %v1405 = vpop.f32.mrb[0].mxu0
          %v1406 = vpop.f32.mrb[0].mxu0
          %v1407 = vadd.f32 0.0, %v1406
          %v1408 = vpop.f32.mrb[0].mxu0
          %1409 = vmatprep.mubr.bf16.mxu0 0
          %1410 = vmatmul.mubr.bf16.gmra.mrb[0].mxu0 %v1300
          %v1411 = vpop.f32.mrb[0].mxu0
          %v1412 = vadd.f32 0.0, %v1411
          %v1413 = vpop.f32.mrb[0].mxu0
          %v1414 = vpop.f32.mrb[0].mxu0
          %v1415 = vadd.f32 0.0, %v1414
          %v1416 = vpop.f32.mrb[0].mxu0
          %1417 = vmatprep.mubr.bf16.mxu0 0
          %1418 = vmatmul.mubr.bf16.gmra.mrb[0].mxu0 %v1303
          %v1419 = vpop.f32.mrb[0].mxu0
          %v1420 = vadd.f32 0.0, %v1419
          %v1421 = vpop.f32.mrb[0].mxu0
          %v1422 = vpop.f32.mrb[0].mxu0
          %v1423 = vadd.f32 0.0, %v1422
          %v1424 = vpop.f32.mrb[0].mxu0
          %1425 = vmatprep.mubr.bf16.mxu0 0
          %1426 = vmatmul.mubr.bf16.gmra.mrb[0].mxu0 %v1306
          %v1427 = vpop.f32.mrb[0].mxu0
          %v1428 = vadd.f32 0.0, %v1427
          %v1429 = vpop.f32.mrb[0].mxu0
          %v1430 = vpop.f32.mrb[0].mxu0
          %v1431 = vadd.f32 0.0, %v1430
          %v1432 = vpop.f32.mrb[0].mxu0
          %1433 = vmatprep.mubr.bf16.mxu0 0
          %1434 = vmatmul.mubr.bf16.gmra.mrb[0].mxu0 %v1309
          %v1435 = vpop.f32.mrb[0].mxu0
          %v1436 = vadd.f32 0.0, %v1435
          %v1437 = vpop.f32.mrb[0].mxu0
          %v1438 = vpop.f32.mrb[0].mxu0
          %v1439 = vadd.f32 0.0, %v1438
          %v1440 = vpop.f32.mrb[0].mxu0
          %1441 = vmatprep.mubr.bf16.mxu0 0
          %1442 = vmatmul.mubr.bf16.gmra.mrb[0].mxu0 %v1312
          %v1443 = vpop.f32.mrb[0].mxu0
          %v1444 = vadd.f32 0.0, %v1443
          %v1445 = vpop.f32.mrb[0].mxu0
          %v1446 = vpop.f32.mrb[0].mxu0
          %v1447 = vadd.f32 0.0, %v1446
          %v1448 = vpop.f32.mrb[0].mxu0
          %1449 = vmatprep.mubr.bf16.mxu0 0
          %1450 = vmatmul.mubr.bf16.gmra.mrb[0].mxu0 %v1315
          %v1451 = vpop.f32.mrb[0].mxu0
          %v1452 = vadd.f32 0.0, %v1451
          %v1453 = vpop.f32.mrb[0].mxu0
          %v1454 = vpop.f32.mrb[0].mxu0
          %v1455 = vadd.f32 0.0, %v1454
          %v1456 = vpop.f32.mrb[0].mxu0
          %1457 = vmatprep.mubr.bf16.mxu0 0
          %1458 = vmatmul.mubr.bf16.gmra.mrb[0].mxu0 %v1318
          %v1459 = vpop.f32.mrb[0].mxu0
          %v1460 = vadd.f32 0.0, %v1459
          %v1461 = vpop.f32.mrb[0].mxu0
          %v1462 = vpop.f32.mrb[0].mxu0
          %v1463 = vadd.f32 0.0, %v1462
          %v1464 = vpop.f32.mrb[0].mxu0
          %1465 = vmatprep.mubr.bf16.mxu0 0
          %1466 = vmatmul.mubr.bf16.gmra.mrb[0].mxu0 %v1321
          %v1467 = vpop.f32.mrb[0].mxu0
          %v1468 = vadd.f32 0.0, %v1467
          %v1469 = vpop.f32.mrb[0].mxu0
          %v1470 = vpop.f32.mrb[0].mxu0
          %v1471 = vadd.f32 0.0, %v1470
          %v1472 = vpop.f32.mrb[0].mxu0
          %1473 = vmatprep.mubr.bf16.mxu0 0
          %1474 = vmatmul.mubr.bf16.gmra.mrb[0].mxu0 %v1324
          %v1475 = vpop.f32.mrb[0].mxu0
          %v1476 = vadd.f32 0.0, %v1475
          %v1477 = vpop.f32.mrb[0].mxu0
          %v1478 = vpop.f32.mrb[0].mxu0
          %v1479 = vadd.f32 0.0, %v1478
          %v1480 = vpop.f32.mrb[0].mxu0
          %1481 = vmatprep.mubr.bf16.mxu0 0
          %1482 = vmatmul.mubr.bf16.gmra.mrb[0].mxu0 %v1327
          %v1483 = vpop.f32.mrb[0].mxu0
          %v1484 = vadd.f32 0.0, %v1483
          %v1485 = vpop.f32.mrb[0].mxu0
          %v1486 = vpop.f32.mrb[0].mxu0
          %v1487 = vadd.f32 0.0, %v1486
          %v1488 = vpop.f32.mrb[0].mxu0
          %1489 = vdwg.mxu0
          %1490 = vst.msk [vmem:[#allocation2] sm:$0xff] %vm971, %v1364
          %1491 = vst.msk [vmem:[#allocation2 + $0x8] sm:$0xff] %vm971, %v1367
          %1492 = vst.msk [vmem:[#allocation2 + $0x10] sm:$0xff] %vm971, %v1372
          %1493 = vst.msk [vmem:[#allocation2 + $0x18] sm:$0xff] %vm971, %v1375
          %1494 = vst.msk [vmem:[#allocation2 + $0x20] sm:$0xff] %vm971, %v1380
          %1495 = vst.msk [vmem:[#allocation2 + $0x28] sm:$0xff] %vm971, %v1383
          %1496 = vst.msk [vmem:[#allocation2 + $0x30] sm:$0xff] %vm971, %v1388
          %1497 = vst.msk [vmem:[#allocation2 + $0x38] sm:$0xff] %vm971, %v1391
          %1498 = vst.msk [vmem:[#allocation2 + $0x40] sm:$0xff] %vm971, %v1396
          %1499 = vst.msk [vmem:[#allocation2 + $0x48] sm:$0xff] %vm971, %v1399
          %1500 = vst.msk [vmem:[#allocation2 + $0x50] sm:$0xff] %vm971, %v1404
          %1501 = vst.msk [vmem:[#allocation2 + $0x58] sm:$0xff] %vm971, %v1407
          %1502 = vst.msk [vmem:[#allocation2 + $0x60] sm:$0xff] %vm971, %v1412
          %1503 = vst.msk [vmem:[#allocation2 + $0x68] sm:$0xff] %vm971, %v1415
          %1504 = vst.msk [vmem:[#allocation2 + $0x70] sm:$0xff] %vm971, %v1420
          %1505 = vst.msk [vmem:[#allocation2 + $0x78] sm:$0xff] %vm971, %v1423
          %1506 = vst.msk [vmem:[#allocation2 + $0x80] sm:$0xff] %vm971, %v1428
          %1507 = vst.msk [vmem:[#allocation2 + $0x88] sm:$0xff] %vm971, %v1431
          %1508 = vst.msk [vmem:[#allocation2 + $0x90] sm:$0xff] %vm971, %v1436
          %1509 = vst.msk [vmem:[#allocation2 + $0x98] sm:$0xff] %vm971, %v1439
          %1510 = vst.msk [vmem:[#allocation2 + $0xa0] sm:$0xff] %vm971, %v1444
          %1511 = vst.msk [vmem:[#allocation2 + $0xa8] sm:$0xff] %vm971, %v1447
          %1512 = vst.msk [vmem:[#allocation2 + $0xb0] sm:$0xff] %vm971, %v1452
          %1513 = vst.msk [vmem:[#allocation2 + $0xb8] sm:$0xff] %vm971, %v1455
          %1514 = vst.msk [vmem:[#allocation2 + $0xc0] sm:$0xff] %vm971, %v1460
          %1515 = vst.msk [vmem:[#allocation2 + $0xc8] sm:$0xff] %vm971, %v1463
          %1516 = vst.msk [vmem:[#allocation2 + $0xd0] sm:$0xff] %vm971, %v1468
          %1517 = vst.msk [vmem:[#allocation2 + $0xd8] sm:$0xff] %vm971, %v1471
          %1518 = vst.msk [vmem:[#allocation2 + $0xe0] sm:$0xff] %vm971, %v1476
          %1519 = vst.msk [vmem:[#allocation2 + $0xe8] sm:$0xff] %vm971, %v1479
          %1520 = vst.msk [vmem:[#allocation2 + $0xf0] sm:$0xff] %vm971, %v1484
          %1521 = vst.msk [vmem:[#allocation2 + $0xf8] sm:$0xff] %vm971, %v1487
          %v1522 = vld [vmem:[#allocation2] sm:$0xff]
          %v1523 = vld [vmem:[#allocation2 + $0x8] sm:$0xff]
          %v1524 = vld [vmem:[#allocation2 + $0x10] sm:$0xff]
          %v1525 = vld [vmem:[#allocation2 + $0x18] sm:$0xff]
          %v1526 = vld [vmem:[#allocation2 + $0x20] sm:$0xff]
          %v1527 = vld [vmem:[#allocation2 + $0x28] sm:$0xff]
          %v1528 = vld [vmem:[#allocation2 + $0x30] sm:$0xff]
          %v1529 = vld [vmem:[#allocation2 + $0x38] sm:$0xff]
          %v1530 = vld [vmem:[#allocation2 + $0x40] sm:$0xff]
          %v1531 = vld [vmem:[#allocation2 + $0x48] sm:$0xff]
          %v1532 = vld [vmem:[#allocation2 + $0x50] sm:$0xff]
          %v1533 = vld [vmem:[#allocation2 + $0x58] sm:$0xff]
          %v1534 = vld [vmem:[#allocation2 + $0x60] sm:$0xff]
          %v1535 = vld [vmem:[#allocation2 + $0x68] sm:$0xff]
          %v1536 = vld [vmem:[#allocation2 + $0x70] sm:$0xff]
          %v1537 = vld [vmem:[#allocation2 + $0x78] sm:$0xff]
          %v1538 = vld [vmem:[#allocation2 + $0x80] sm:$0xff]
          %v1539 = vld [vmem:[#allocation2 + $0x88] sm:$0xff]
          %v1540 = vld [vmem:[#allocation2 + $0x90] sm:$0xff]
          %v1541 = vld [vmem:[#allocation2 + $0x98] sm:$0xff]
          %v1542 = vld [vmem:[#allocation2 + $0xa0] sm:$0xff]
          %v1543 = vld [vmem:[#allocation2 + $0xa8] sm:$0xff]
          %v1544 = vld [vmem:[#allocation2 + $0xb0] sm:$0xff]
          %v1545 = vld [vmem:[#allocation2 + $0xb8] sm:$0xff]
          %v1546 = vld [vmem:[#allocation2 + $0xc0] sm:$0xff]
          %v1547 = vld [vmem:[#allocation2 + $0xc8] sm:$0xff]
          %v1548 = vld [vmem:[#allocation2 + $0xd0] sm:$0xff]
          %v1549 = vld [vmem:[#allocation2 + $0xd8] sm:$0xff]
          %v1550 = vld [vmem:[#allocation2 + $0xe0] sm:$0xff]
          %v1551 = vld [vmem:[#allocation2 + $0xe8] sm:$0xff]
          %v1552 = vld [vmem:[#allocation2 + $0xf0] sm:$0xff]
          %v1553 = vld [vmem:[#allocation2 + $0xf8] sm:$0xff]
          %v1554 = vld [vmem:[%s970] sm:$0xff]
          %v1555 = vld [vmem:[%s970 + $0x8] sm:$0xff]
          %v1556 = vld [vmem:[%s970 + $0x10] sm:$0xff]
          %v1557 = vld [vmem:[%s970 + $0x18] sm:$0xff]
          %v1558 = vld [vmem:[%s970 + $0x20] sm:$0xff]
          %v1559 = vld [vmem:[%s970 + $0x28] sm:$0xff]
          %v1560 = vld [vmem:[%s970 + $0x30] sm:$0xff]
          %v1561 = vld [vmem:[%s970 + $0x38] sm:$0xff]
          %v1562 = vld [vmem:[%s970 + $0x40] sm:$0xff]
          %v1563 = vld [vmem:[%s970 + $0x48] sm:$0xff]
          %v1564 = vld [vmem:[%s970 + $0x50] sm:$0xff]
          %v1565 = vld [vmem:[%s970 + $0x58] sm:$0xff]
          %v1566 = vld [vmem:[%s970 + $0x60] sm:$0xff]
          %v1567 = vld [vmem:[%s970 + $0x68] sm:$0xff]
          %v1568 = vld [vmem:[%s970 + $0x70] sm:$0xff]
          %v1569 = vld [vmem:[%s970 + $0x78] sm:$0xff]
          %s1570 = scalar_lea.vmem %s3, 48
          %v1571 = vld [vmem:[%s1570] sm:$0xf]
          %v1572 = vld [vmem:[%s1570 + $0x4] sm:$0xf]
          %v1573 = vld [vmem:[%s1570 + $0x8] sm:$0xf]
          %v1574 = vld [vmem:[%s1570 + $0xc] sm:$0xf]
          %v1575 = vld [vmem:[%s1570 + $0x10] sm:$0xf]
          %v1576 = vld [vmem:[%s1570 + $0x14] sm:$0xf]
          %v1577 = vld [vmem:[%s1570 + $0x18] sm:$0xf]
          %v1578 = vld [vmem:[%s1570 + $0x1c] sm:$0xf]
          %v1579 = vld [vmem:[%s1570 + $0x20] sm:$0xf]
          %v1580 = vld [vmem:[%s1570 + $0x24] sm:$0xf]
          %v1581 = vld [vmem:[%s1570 + $0x28] sm:$0xf]
          %v1582 = vld [vmem:[%s1570 + $0x2c] sm:$0xf]
          %v1595 = vunpack.c.l.b16 %v1571
          %v1596 = vunpack.c.l.b16 %v1572
          %v1597 = vunpack.c.l.b16 %v1573
          %v1598 = vunpack.c.l.b16 %v1574
          %v1599 = vunpack.c.l.b16 %v1575
          %v1600 = vunpack.c.l.b16 %v1576
          %v1601 = vunpack.c.l.b16 %v1577
          %v1602 = vunpack.c.l.b16 %v1578
          %v1603 = vunpack.c.l.b16 %v1579
          %v1604 = vunpack.c.l.b16 %v1580
          %v1605 = vunpack.c.l.b16 %v1581
          %v1606 = vunpack.c.l.b16 %v1582
          %v1607 = vpack.c.b16 %v1596, %v1595
          %v1608 = vpack.c.b16 %v1598, %v1597
          %v1609 = vpack.c.b16 %v1600, %v1599
          %v1610 = vpack.c.b16 %v1602, %v1601
          %v1611 = vpack.c.b16 %v1604, %v1603
          %v1612 = vpack.c.b16 %v1606, %v1605
          %v1620 = vsel %vm819, %v1554, 0
          %v1623 = vsel %vm819, %v1555, 0
          %v1626 = vsel %vm819, %v1556, 0
          %v1629 = vsel %vm819, %v1557, 0
          %v1632 = vsel %vm819, %v1558, 0
          %v1635 = vsel %vm819, %v1559, 0
          %v1638 = vsel %vm819, %v1560, 0
          %v1641 = vsel %vm819, %v1561, 0
          %v1644 = vsel %vm819, %v1562, 0
          %v1647 = vsel %vm819, %v1563, 0
          %v1650 = vsel %vm819, %v1564, 0
          %v1653 = vsel %vm819, %v1565, 0
          %v1656 = vsel %vm819, %v1566, 0
          %v1659 = vsel %vm819, %v1567, 0
          %v1662 = vsel %vm819, %v1568, 0
          %v1665 = vsel %vm819, %v1569, 0
          %1667 = vmatprep.subr.bf16.mxu0 0
          %1668 = vmatpush1.bf16.msra.mxu0 %v1607
          %1669 = vmatprep.subr.bf16.mxu0 0
          %1670 = vmatpush1.bf16.msra.mxu0 %v1608
          %1671 = vmatprep.subr.bf16.mxu0 0
          %1672 = vmatpush1.bf16.msra.mxu0 %v1609
          %1673 = vmatprep.subr.bf16.mxu0 0
          %1674 = vmatpush1.bf16.msra.mxu0 %v1610
          %1675 = vmatprep.subr.bf16.mxu0 0
          %1676 = vmatpush1.bf16.msra.mxu0 %v1611
          %1677 = vmatprep.subr.bf16.mxu0 0
          %1678 = vmatpush1.bf16.msra.mxu0 %v1612
          %1679 = vmatprep.subr.bf16.mxu0 0
          %1680 = vmatpush1.bf16.msra.mxu0 0
          %1681 = vmatprep.subr.bf16.mxu0 0
          %1682 = vmatpush1.bf16.msra.mxu0 0
          %1683 = vmatprep.subr.bf16.mxu0 0
          %1684 = vmatpush1.bf16.msra.mxu0 0
          %1685 = vmatprep.subr.bf16.mxu0 0
          %1686 = vmatpush1.bf16.msra.mxu0 0
          %1687 = vmatprep.subr.bf16.mxu0 0
          %1688 = vmatpush1.bf16.msra.mxu0 0
          %1689 = vmatprep.subr.bf16.mxu0 0
          %1690 = vmatpush1.bf16.msra.mxu0 0
          %1691 = vmatprep.subr.bf16.mxu0 0
          %1692 = vmatpush1.bf16.msra.mxu0 0
          %1693 = vmatprep.subr.bf16.mxu0 0
          %1694 = vmatpush1.bf16.msra.mxu0 0
          %1695 = vmatprep.subr.bf16.mxu0 0
          %1696 = vmatpush1.bf16.msra.mxu0 0
          %1697 = vmatprep.subr.bf16.mxu0 0
          %1698 = vmatpush1.bf16.msra.mxu0 0
          %1699 = vmatprep.mubr.bf16.mxu0 0
          %1700 = vmatmul.mubr.bf16.gmra.mrb[0].mxu0 %v1620
          %v1701 = vpop.f32.mrb[0].mxu0
          %v1702 = vadd.f32 0.0, %v1701
          %v1703 = vpop.f32.mrb[0].mxu0
          %v1704 = vpop.f32.mrb[0].mxu0
          %v1705 = vadd.f32 0.0, %v1704
          %v1706 = vpop.f32.mrb[0].mxu0
          %1707 = vmatprep.mubr.bf16.mxu0 0
          %1708 = vmatmul.mubr.bf16.gmra.mrb[0].mxu0 %v1623
          %v1709 = vpop.f32.mrb[0].mxu0
          %v1710 = vadd.f32 0.0, %v1709
          %v1711 = vpop.f32.mrb[0].mxu0
          %v1712 = vpop.f32.mrb[0].mxu0
          %v1713 = vadd.f32 0.0, %v1712
          %v1714 = vpop.f32.mrb[0].mxu0
          %1715 = vmatprep.mubr.bf16.mxu0 0
          %1716 = vmatmul.mubr.bf16.gmra.mrb[0].mxu0 %v1626
          %v1717 = vpop.f32.mrb[0].mxu0
          %v1718 = vadd.f32 0.0, %v1717
          %v1719 = vpop.f32.mrb[0].mxu0
          %v1720 = vpop.f32.mrb[0].mxu0
          %v1721 = vadd.f32 0.0, %v1720
          %v1722 = vpop.f32.mrb[0].mxu0
          %1723 = vmatprep.mubr.bf16.mxu0 0
          %1724 = vmatmul.mubr.bf16.gmra.mrb[0].mxu0 %v1629
          %v1725 = vpop.f32.mrb[0].mxu0
          %v1726 = vadd.f32 0.0, %v1725
          %v1727 = vpop.f32.mrb[0].mxu0
          %v1728 = vpop.f32.mrb[0].mxu0
          %v1729 = vadd.f32 0.0, %v1728
          %v1730 = vpop.f32.mrb[0].mxu0
          %1731 = vmatprep.mubr.bf16.mxu0 0
          %1732 = vmatmul.mubr.bf16.gmra.mrb[0].mxu0 %v1632
          %v1733 = vpop.f32.mrb[0].mxu0
          %v1734 = vadd.f32 0.0, %v1733
          %v1735 = vpop.f32.mrb[0].mxu0
          %v1736 = vpop.f32.mrb[0].mxu0
          %v1737 = vadd.f32 0.0, %v1736
          %v1738 = vpop.f32.mrb[0].mxu0
          %1739 = vmatprep.mubr.bf16.mxu0 0
          %1740 = vmatmul.mubr.bf16.gmra.mrb[0].mxu0 %v1635
          %v1741 = vpop.f32.mrb[0].mxu0
          %v1742 = vadd.f32 0.0, %v1741
          %v1743 = vpop.f32.mrb[0].mxu0
          %v1744 = vpop.f32.mrb[0].mxu0
          %v1745 = vadd.f32 0.0, %v1744
          %v1746 = vpop.f32.mrb[0].mxu0
          %1747 = vmatprep.mubr.bf16.mxu0 0
          %1748 = vmatmul.mubr.bf16.gmra.mrb[0].mxu0 %v1638
          %v1749 = vpop.f32.mrb[0].mxu0
          %v1750 = vadd.f32 0.0, %v1749
          %v1751 = vpop.f32.mrb[0].mxu0
          %v1752 = vpop.f32.mrb[0].mxu0
          %v1753 = vadd.f32 0.0, %v1752
          %v1754 = vpop.f32.mrb[0].mxu0
          %1755 = vmatprep.mubr.bf16.mxu0 0
          %1756 = vmatmul.mubr.bf16.gmra.mrb[0].mxu0 %v1641
          %v1757 = vpop.f32.mrb[0].mxu0
          %v1758 = vadd.f32 0.0, %v1757
          %v1759 = vpop.f32.mrb[0].mxu0
          %v1760 = vpop.f32.mrb[0].mxu0
          %v1761 = vadd.f32 0.0, %v1760
          %v1762 = vpop.f32.mrb[0].mxu0
          %1763 = vmatprep.mubr.bf16.mxu0 0
          %1764 = vmatmul.mubr.bf16.gmra.mrb[0].mxu0 %v1644
          %v1765 = vpop.f32.mrb[0].mxu0
          %v1766 = vadd.f32 0.0, %v1765
          %v1767 = vpop.f32.mrb[0].mxu0
          %v1768 = vpop.f32.mrb[0].mxu0
          %v1769 = vadd.f32 0.0, %v1768
          %v1770 = vpop.f32.mrb[0].mxu0
          %1771 = vmatprep.mubr.bf16.mxu0 0
          %1772 = vmatmul.mubr.bf16.gmra.mrb[0].mxu0 %v1647
          %v1773 = vpop.f32.mrb[0].mxu0
          %v1774 = vadd.f32 0.0, %v1773
          %v1775 = vpop.f32.mrb[0].mxu0
          %v1776 = vpop.f32.mrb[0].mxu0
          %v1777 = vadd.f32 0.0, %v1776
          %v1778 = vpop.f32.mrb[0].mxu0
          %1779 = vmatprep.mubr.bf16.mxu0 0
          %1780 = vmatmul.mubr.bf16.gmra.mrb[0].mxu0 %v1650
          %v1781 = vpop.f32.mrb[0].mxu0
          %v1782 = vadd.f32 0.0, %v1781
          %v1783 = vpop.f32.mrb[0].mxu0
          %v1784 = vpop.f32.mrb[0].mxu0
          %v1785 = vadd.f32 0.0, %v1784
          %v1786 = vpop.f32.mrb[0].mxu0
          %1787 = vmatprep.mubr.bf16.mxu0 0
          %1788 = vmatmul.mubr.bf16.gmra.mrb[0].mxu0 %v1653
          %v1789 = vpop.f32.mrb[0].mxu0
          %v1790 = vadd.f32 0.0, %v1789
          %v1791 = vpop.f32.mrb[0].mxu0
          %v1792 = vpop.f32.mrb[0].mxu0
          %v1793 = vadd.f32 0.0, %v1792
          %v1794 = vpop.f32.mrb[0].mxu0
          %1795 = vmatprep.mubr.bf16.mxu0 0
          %1796 = vmatmul.mubr.bf16.gmra.mrb[0].mxu0 %v1656
          %v1797 = vpop.f32.mrb[0].mxu0
          %v1798 = vadd.f32 0.0, %v1797
          %v1799 = vpop.f32.mrb[0].mxu0
          %v1800 = vpop.f32.mrb[0].mxu0
          %v1801 = vadd.f32 0.0, %v1800
          %v1802 = vpop.f32.mrb[0].mxu0
          %1803 = vmatprep.mubr.bf16.mxu0 0
          %1804 = vmatmul.mubr.bf16.gmra.mrb[0].mxu0 %v1659
          %v1805 = vpop.f32.mrb[0].mxu0
          %v1806 = vadd.f32 0.0, %v1805
          %v1807 = vpop.f32.mrb[0].mxu0
          %v1808 = vpop.f32.mrb[0].mxu0
          %v1809 = vadd.f32 0.0, %v1808
          %v1810 = vpop.f32.mrb[0].mxu0
          %1811 = vmatprep.mubr.bf16.mxu0 0
          %1812 = vmatmul.mubr.bf16.gmra.mrb[0].mxu0 %v1662
          %v1813 = vpop.f32.mrb[0].mxu0
          %v1814 = vadd.f32 0.0, %v1813
          %v1815 = vpop.f32.mrb[0].mxu0
          %v1816 = vpop.f32.mrb[0].mxu0
          %v1817 = vadd.f32 0.0, %v1816
          %v1818 = vpop.f32.mrb[0].mxu0
          %1819 = vmatprep.mubr.bf16.mxu0 0
          %1820 = vmatmul.mubr.bf16.gmra.mrb[0].mxu0 %v1665
          %v1821 = vpop.f32.mrb[0].mxu0
          %v1822 = vadd.f32 0.0, %v1821
          %v1823 = vpop.f32.mrb[0].mxu0
          %v1824 = vpop.f32.mrb[0].mxu0
          %v1825 = vadd.f32 0.0, %v1824
          %v1826 = vpop.f32.mrb[0].mxu0
          %1827 = vdwg.mxu0
          %v1828 = vadd.f32 %v1522, %v1702
          %v1829 = vadd.f32 %v1523, %v1705
          %v1830 = vadd.f32 %v1524, %v1710
          %v1831 = vadd.f32 %v1525, %v1713
          %v1832 = vadd.f32 %v1526, %v1718
          %v1833 = vadd.f32 %v1527, %v1721
          %v1834 = vadd.f32 %v1528, %v1726
          %v1835 = vadd.f32 %v1529, %v1729
          %v1836 = vadd.f32 %v1530, %v1734
          %v1837 = vadd.f32 %v1531, %v1737
          %v1838 = vadd.f32 %v1532, %v1742
          %v1839 = vadd.f32 %v1533, %v1745
          %v1840 = vadd.f32 %v1534, %v1750
          %v1841 = vadd.f32 %v1535, %v1753
          %v1842 = vadd.f32 %v1536, %v1758
          %v1843 = vadd.f32 %v1537, %v1761
          %v1844 = vadd.f32 %v1538, %v1766
          %v1845 = vadd.f32 %v1539, %v1769
          %v1846 = vadd.f32 %v1540, %v1774
          %v1847 = vadd.f32 %v1541, %v1777
          %v1848 = vadd.f32 %v1542, %v1782
          %v1849 = vadd.f32 %v1543, %v1785
          %v1850 = vadd.f32 %v1544, %v1790
          %v1851 = vadd.f32 %v1545, %v1793
          %v1852 = vadd.f32 %v1546, %v1798
          %v1853 = vadd.f32 %v1547, %v1801
          %v1854 = vadd.f32 %v1548, %v1806
          %v1855 = vadd.f32 %v1549, %v1809
          %v1856 = vadd.f32 %v1550, %v1814
          %v1857 = vadd.f32 %v1551, %v1817
          %v1858 = vadd.f32 %v1552, %v1822
          %v1859 = vadd.f32 %v1553, %v1825
          %1860 = vst.msk [vmem:[#allocation2] sm:$0xff] %vm971, %v1828
          %1861 = vst.msk [vmem:[#allocation2 + $0x8] sm:$0xff] %vm971, %v1829
          %1862 = vst.msk [vmem:[#allocation2 + $0x10] sm:$0xff] %vm971, %v1830
          %1863 = vst.msk [vmem:[#allocation2 + $0x18] sm:$0xff] %vm971, %v1831
          %1864 = vst.msk [vmem:[#allocation2 + $0x20] sm:$0xff] %vm971, %v1832
          %1865 = vst.msk [vmem:[#allocation2 + $0x28] sm:$0xff] %vm971, %v1833
          %1866 = vst.msk [vmem:[#allocation2 + $0x30] sm:$0xff] %vm971, %v1834
          %1867 = vst.msk [vmem:[#allocation2 + $0x38] sm:$0xff] %vm971, %v1835
          %1868 = vst.msk [vmem:[#allocation2 + $0x40] sm:$0xff] %vm971, %v1836
          %1869 = vst.msk [vmem:[#allocation2 + $0x48] sm:$0xff] %vm971, %v1837
          %1870 = vst.msk [vmem:[#allocation2 + $0x50] sm:$0xff] %vm971, %v1838
          %1871 = vst.msk [vmem:[#allocation2 + $0x58] sm:$0xff] %vm971, %v1839
          %1872 = vst.msk [vmem:[#allocation2 + $0x60] sm:$0xff] %vm971, %v1840
          %1873 = vst.msk [vmem:[#allocation2 + $0x68] sm:$0xff] %vm971, %v1841
          %1874 = vst.msk [vmem:[#allocation2 + $0x70] sm:$0xff] %vm971, %v1842
          %1875 = vst.msk [vmem:[#allocation2 + $0x78] sm:$0xff] %vm971, %v1843
          %1876 = vst.msk [vmem:[#allocation2 + $0x80] sm:$0xff] %vm971, %v1844
          %1877 = vst.msk [vmem:[#allocation2 + $0x88] sm:$0xff] %vm971, %v1845
          %1878 = vst.msk [vmem:[#allocation2 + $0x90] sm:$0xff] %vm971, %v1846
          %1879 = vst.msk [vmem:[#allocation2 + $0x98] sm:$0xff] %vm971, %v1847
          %1880 = vst.msk [vmem:[#allocation2 + $0xa0] sm:$0xff] %vm971, %v1848
          %1881 = vst.msk [vmem:[#allocation2 + $0xa8] sm:$0xff] %vm971, %v1849
          %1882 = vst.msk [vmem:[#allocation2 + $0xb0] sm:$0xff] %vm971, %v1850
          %1883 = vst.msk [vmem:[#allocation2 + $0xb8] sm:$0xff] %vm971, %v1851
          %1884 = vst.msk [vmem:[#allocation2 + $0xc0] sm:$0xff] %vm971, %v1852
          %1885 = vst.msk [vmem:[#allocation2 + $0xc8] sm:$0xff] %vm971, %v1853
          %1886 = vst.msk [vmem:[#allocation2 + $0xd0] sm:$0xff] %vm971, %v1854
          %1887 = vst.msk [vmem:[#allocation2 + $0xd8] sm:$0xff] %vm971, %v1855
          %1888 = vst.msk [vmem:[#allocation2 + $0xe0] sm:$0xff] %vm971, %v1856
          %1889 = vst.msk [vmem:[#allocation2 + $0xe8] sm:$0xff] %vm971, %v1857
          %1890 = vst.msk [vmem:[#allocation2 + $0xf0] sm:$0xff] %vm971, %v1858
          %1891 = vst.msk [vmem:[#allocation2 + $0xf8] sm:$0xff] %vm971, %v1859
          %v1892 = vld [vmem:[#allocation2] sm:$0xff]
          %v1893 = vld [vmem:[#allocation2 + $0x8] sm:$0xff]
          %v1894 = vld [vmem:[#allocation2 + $0x10] sm:$0xff]
          %v1895 = vld [vmem:[#allocation2 + $0x18] sm:$0xff]
          %v1896 = vld [vmem:[#allocation2 + $0x20] sm:$0xff]
          %v1897 = vld [vmem:[#allocation2 + $0x28] sm:$0xff]
          %v1898 = vld [vmem:[#allocation2 + $0x30] sm:$0xff]
          %v1899 = vld [vmem:[#allocation2 + $0x38] sm:$0xff]
          %v1900 = vld [vmem:[#allocation2 + $0x40] sm:$0xff]
          %v1901 = vld [vmem:[#allocation2 + $0x48] sm:$0xff]
          %v1902 = vld [vmem:[#allocation2 + $0x50] sm:$0xff]
          %v1903 = vld [vmem:[#allocation2 + $0x58] sm:$0xff]
          %v1904 = vld [vmem:[#allocation2 + $0x60] sm:$0xff]
          %v1905 = vld [vmem:[#allocation2 + $0x68] sm:$0xff]
          %v1906 = vld [vmem:[#allocation2 + $0x70] sm:$0xff]
          %v1907 = vld [vmem:[#allocation2 + $0x78] sm:$0xff]
          %v1908 = vld [vmem:[#allocation2 + $0x80] sm:$0xff]
          %v1909 = vld [vmem:[#allocation2 + $0x88] sm:$0xff]
          %v1910 = vld [vmem:[#allocation2 + $0x90] sm:$0xff]
          %v1911 = vld [vmem:[#allocation2 + $0x98] sm:$0xff]
          %v1912 = vld [vmem:[#allocation2 + $0xa0] sm:$0xff]
          %v1913 = vld [vmem:[#allocation2 + $0xa8] sm:$0xff]
          %v1914 = vld [vmem:[#allocation2 + $0xb0] sm:$0xff]
          %v1915 = vld [vmem:[#allocation2 + $0xb8] sm:$0xff]
          %v1916 = vld [vmem:[#allocation2 + $0xc0] sm:$0xff]
          %v1917 = vld [vmem:[#allocation2 + $0xc8] sm:$0xff]
          %v1918 = vld [vmem:[#allocation2 + $0xd0] sm:$0xff]
          %v1919 = vld [vmem:[#allocation2 + $0xd8] sm:$0xff]
          %v1920 = vld [vmem:[#allocation2 + $0xe0] sm:$0xff]
          %v1921 = vld [vmem:[#allocation2 + $0xe8] sm:$0xff]
          %v1922 = vld [vmem:[#allocation2 + $0xf0] sm:$0xff]
          %v1923 = vld [vmem:[#allocation2 + $0xf8] sm:$0xff]
          %s1924 = scalar_lea.vmem [#allocation3], 16
          %v1925 = vld [vmem:[%s1924] sm:$0xff]
          %v1926 = vld [vmem:[%s1924 + $0x8] sm:$0xff]
          %v1927 = vld [vmem:[%s1924 + $0x10] sm:$0xff]
          %v1928 = vld [vmem:[%s1924 + $0x18] sm:$0xff]
          %v1929 = vld [vmem:[%s1924 + $0x20] sm:$0xff]
          %v1930 = vld [vmem:[%s1924 + $0x28] sm:$0xff]
          %v1931 = vld [vmem:[%s1924 + $0x30] sm:$0xff]
          %v1932 = vld [vmem:[%s1924 + $0x38] sm:$0xff]
          %v1933 = vld [vmem:[%s1924 + $0x40] sm:$0xff]
          %v1934 = vld [vmem:[%s1924 + $0x48] sm:$0xff]
          %v1935 = vld [vmem:[%s1924 + $0x50] sm:$0xff]
          %v1936 = vld [vmem:[%s1924 + $0x58] sm:$0xff]
          %v1937 = vld [vmem:[%s1924 + $0x60] sm:$0xff]
          %v1938 = vld [vmem:[%s1924 + $0x68] sm:$0xff]
          %v1939 = vld [vmem:[%s1924 + $0x70] sm:$0xff]
          %v1940 = vld [vmem:[%s1924 + $0x78] sm:$0xff]
          %s1941 = scalar_lea.vmem %s3, 96
          %v1942 = vld [vmem:[%s1941] sm:$0xf]
          %v1943 = vld [vmem:[%s1941 + $0x4] sm:$0xf]
          %v1944 = vld [vmem:[%s1941 + $0x8] sm:$0xf]
          %v1945 = vld [vmem:[%s1941 + $0xc] sm:$0xf]
          %v1946 = vld [vmem:[%s1941 + $0x10] sm:$0xf]
          %v1947 = vld [vmem:[%s1941 + $0x14] sm:$0xf]
          %v1948 = vld [vmem:[%s1941 + $0x18] sm:$0xf]
          %v1949 = vld [vmem:[%s1941 + $0x1c] sm:$0xf]
          %v1950 = vld [vmem:[%s1941 + $0x20] sm:$0xf]
          %v1951 = vld [vmem:[%s1941 + $0x24] sm:$0xf]
          %v1952 = vld [vmem:[%s1941 + $0x28] sm:$0xf]
          %v1953 = vld [vmem:[%s1941 + $0x2c] sm:$0xf]
          %v1966 = vunpack.c.l.b16 %v1942
          %v1967 = vunpack.c.l.b16 %v1943
          %v1968 = vunpack.c.l.b16 %v1944
          %v1969 = vunpack.c.l.b16 %v1945
          %v1970 = vunpack.c.l.b16 %v1946
          %v1971 = vunpack.c.l.b16 %v1947
          %v1972 = vunpack.c.l.b16 %v1948
          %v1973 = vunpack.c.l.b16 %v1949
          %v1974 = vunpack.c.l.b16 %v1950
          %v1975 = vunpack.c.l.b16 %v1951
          %v1976 = vunpack.c.l.b16 %v1952
          %v1977 = vunpack.c.l.b16 %v1953
          %v1978 = vpack.c.b16 %v1967, %v1966
          %v1979 = vpack.c.b16 %v1969, %v1968
          %v1980 = vpack.c.b16 %v1971, %v1970
          %v1981 = vpack.c.b16 %v1973, %v1972
          %v1982 = vpack.c.b16 %v1975, %v1974
          %v1983 = vpack.c.b16 %v1977, %v1976
          %v1991 = vsel %vm819, %v1925, 0
          %v1994 = vsel %vm819, %v1926, 0
          %v1997 = vsel %vm819, %v1927, 0
          %v2000 = vsel %vm819, %v1928, 0
          %v2003 = vsel %vm819, %v1929, 0
          %v2006 = vsel %vm819, %v1930, 0
          %v2009 = vsel %vm819, %v1931, 0
          %v2012 = vsel %vm819, %v1932, 0
          %v2015 = vsel %vm819, %v1933, 0
          %v2018 = vsel %vm819, %v1934, 0
          %v2021 = vsel %vm819, %v1935, 0
          %v2024 = vsel %vm819, %v1936, 0
          %v2027 = vsel %vm819, %v1937, 0
          %v2030 = vsel %vm819, %v1938, 0
          %v2033 = vsel %vm819, %v1939, 0
          %v2036 = vsel %vm819, %v1940, 0
          %2038 = vmatprep.subr.bf16.mxu0 0
          %2039 = vmatpush1.bf16.msra.mxu0 %v1978
          %2040 = vmatprep.subr.bf16.mxu0 0
          %2041 = vmatpush1.bf16.msra.mxu0 %v1979
          %2042 = vmatprep.subr.bf16.mxu0 0
          %2043 = vmatpush1.bf16.msra.mxu0 %v1980
          %2044 = vmatprep.subr.bf16.mxu0 0
          %2045 = vmatpush1.bf16.msra.mxu0 %v1981
          %2046 = vmatprep.subr.bf16.mxu0 0
          %2047 = vmatpush1.bf16.msra.mxu0 %v1982
          %2048 = vmatprep.subr.bf16.mxu0 0
          %2049 = vmatpush1.bf16.msra.mxu0 %v1983
          %2050 = vmatprep.subr.bf16.mxu0 0
          %2051 = vmatpush1.bf16.msra.mxu0 0
          %2052 = vmatprep.subr.bf16.mxu0 0
          %2053 = vmatpush1.bf16.msra.mxu0 0
          %2054 = vmatprep.subr.bf16.mxu0 0
          %2055 = vmatpush1.bf16.msra.mxu0 0
          %2056 = vmatprep.subr.bf16.mxu0 0
          %2057 = vmatpush1.bf16.msra.mxu0 0
          %2058 = vmatprep.subr.bf16.mxu0 0
          %2059 = vmatpush1.bf16.msra.mxu0 0
          %2060 = vmatprep.subr.bf16.mxu0 0
          %2061 = vmatpush1.bf16.msra.mxu0 0
          %2062 = vmatprep.subr.bf16.mxu0 0
          %2063 = vmatpush1.bf16.msra.mxu0 0
          %2064 = vmatprep.subr.bf16.mxu0 0
          %2065 = vmatpush1.bf16.msra.mxu0 0
          %2066 = vmatprep.subr.bf16.mxu0 0
          %2067 = vmatpush1.bf16.msra.mxu0 0
          %2068 = vmatprep.subr.bf16.mxu0 0
          %2069 = vmatpush1.bf16.msra.mxu0 0
          %2070 = vmatprep.mubr.bf16.mxu0 0
          %2071 = vmatmul.mubr.bf16.gmra.mrb[0].mxu0 %v1991
          %v2072 = vpop.f32.mrb[0].mxu0
          %v2073 = vadd.f32 0.0, %v2072
          %v2074 = vpop.f32.mrb[0].mxu0
          %v2075 = vpop.f32.mrb[0].mxu0
          %v2076 = vadd.f32 0.0, %v2075
          %v2077 = vpop.f32.mrb[0].mxu0
          %2078 = vmatprep.mubr.bf16.mxu0 0
          %2079 = vmatmul.mubr.bf16.gmra.mrb[0].mxu0 %v1994
          %v2080 = vpop.f32.mrb[0].mxu0
          %v2081 = vadd.f32 0.0, %v2080
          %v2082 = vpop.f32.mrb[0].mxu0
          %v2083 = vpop.f32.mrb[0].mxu0
          %v2084 = vadd.f32 0.0, %v2083
          %v2085 = vpop.f32.mrb[0].mxu0
          %2086 = vmatprep.mubr.bf16.mxu0 0
          %2087 = vmatmul.mubr.bf16.gmra.mrb[0].mxu0 %v1997
          %v2088 = vpop.f32.mrb[0].mxu0
          %v2089 = vadd.f32 0.0, %v2088
          %v2090 = vpop.f32.mrb[0].mxu0
          %v2091 = vpop.f32.mrb[0].mxu0
          %v2092 = vadd.f32 0.0, %v2091
          %v2093 = vpop.f32.mrb[0].mxu0
          %2094 = vmatprep.mubr.bf16.mxu0 0
          %2095 = vmatmul.mubr.bf16.gmra.mrb[0].mxu0 %v2000
          %v2096 = vpop.f32.mrb[0].mxu0
          %v2097 = vadd.f32 0.0, %v2096
          %v2098 = vpop.f32.mrb[0].mxu0
          %v2099 = vpop.f32.mrb[0].mxu0
          %v2100 = vadd.f32 0.0, %v2099
          %v2101 = vpop.f32.mrb[0].mxu0
          %2102 = vmatprep.mubr.bf16.mxu0 0
          %2103 = vmatmul.mubr.bf16.gmra.mrb[0].mxu0 %v2003
          %v2104 = vpop.f32.mrb[0].mxu0
          %v2105 = vadd.f32 0.0, %v2104
          %v2106 = vpop.f32.mrb[0].mxu0
          %v2107 = vpop.f32.mrb[0].mxu0
          %v2108 = vadd.f32 0.0, %v2107
          %v2109 = vpop.f32.mrb[0].mxu0
          %2110 = vmatprep.mubr.bf16.mxu0 0
          %2111 = vmatmul.mubr.bf16.gmra.mrb[0].mxu0 %v2006
          %v2112 = vpop.f32.mrb[0].mxu0
          %v2113 = vadd.f32 0.0, %v2112
          %v2114 = vpop.f32.mrb[0].mxu0
          %v2115 = vpop.f32.mrb[0].mxu0
          %v2116 = vadd.f32 0.0, %v2115
          %v2117 = vpop.f32.mrb[0].mxu0
          %2118 = vmatprep.mubr.bf16.mxu0 0
          %2119 = vmatmul.mubr.bf16.gmra.mrb[0].mxu0 %v2009
          %v2120 = vpop.f32.mrb[0].mxu0
          %v2121 = vadd.f32 0.0, %v2120
          %v2122 = vpop.f32.mrb[0].mxu0
          %v2123 = vpop.f32.mrb[0].mxu0
          %v2124 = vadd.f32 0.0, %v2123
          %v2125 = vpop.f32.mrb[0].mxu0
          %2126 = vmatprep.mubr.bf16.mxu0 0
          %2127 = vmatmul.mubr.bf16.gmra.mrb[0].mxu0 %v2012
          %v2128 = vpop.f32.mrb[0].mxu0
          %v2129 = vadd.f32 0.0, %v2128
          %v2130 = vpop.f32.mrb[0].mxu0
          %v2131 = vpop.f32.mrb[0].mxu0
          %v2132 = vadd.f32 0.0, %v2131
          %v2133 = vpop.f32.mrb[0].mxu0
          %2134 = vmatprep.mubr.bf16.mxu0 0
          %2135 = vmatmul.mubr.bf16.gmra.mrb[0].mxu0 %v2015
          %v2136 = vpop.f32.mrb[0].mxu0
          %v2137 = vadd.f32 0.0, %v2136
          %v2138 = vpop.f32.mrb[0].mxu0
          %v2139 = vpop.f32.mrb[0].mxu0
          %v2140 = vadd.f32 0.0, %v2139
          %v2141 = vpop.f32.mrb[0].mxu0
          %2142 = vmatprep.mubr.bf16.mxu0 0
          %2143 = vmatmul.mubr.bf16.gmra.mrb[0].mxu0 %v2018
          %v2144 = vpop.f32.mrb[0].mxu0
          %v2145 = vadd.f32 0.0, %v2144
          %v2146 = vpop.f32.mrb[0].mxu0
          %v2147 = vpop.f32.mrb[0].mxu0
          %v2148 = vadd.f32 0.0, %v2147
          %v2149 = vpop.f32.mrb[0].mxu0
          %2150 = vmatprep.mubr.bf16.mxu0 0
          %2151 = vmatmul.mubr.bf16.gmra.mrb[0].mxu0 %v2021
          %v2152 = vpop.f32.mrb[0].mxu0
          %v2153 = vadd.f32 0.0, %v2152
          %v2154 = vpop.f32.mrb[0].mxu0
          %v2155 = vpop.f32.mrb[0].mxu0
          %v2156 = vadd.f32 0.0, %v2155
          %v2157 = vpop.f32.mrb[0].mxu0
          %2158 = vmatprep.mubr.bf16.mxu0 0
          %2159 = vmatmul.mubr.bf16.gmra.mrb[0].mxu0 %v2024
          %v2160 = vpop.f32.mrb[0].mxu0
          %v2161 = vadd.f32 0.0, %v2160
          %v2162 = vpop.f32.mrb[0].mxu0
          %v2163 = vpop.f32.mrb[0].mxu0
          %v2164 = vadd.f32 0.0, %v2163
          %v2165 = vpop.f32.mrb[0].mxu0
          %2166 = vmatprep.mubr.bf16.mxu0 0
          %2167 = vmatmul.mubr.bf16.gmra.mrb[0].mxu0 %v2027
          %v2168 = vpop.f32.mrb[0].mxu0
          %v2169 = vadd.f32 0.0, %v2168
          %v2170 = vpop.f32.mrb[0].mxu0
          %v2171 = vpop.f32.mrb[0].mxu0
          %v2172 = vadd.f32 0.0, %v2171
          %v2173 = vpop.f32.mrb[0].mxu0
          %2174 = vmatprep.mubr.bf16.mxu0 0
          %2175 = vmatmul.mubr.bf16.gmra.mrb[0].mxu0 %v2030
          %v2176 = vpop.f32.mrb[0].mxu0
          %v2177 = vadd.f32 0.0, %v2176
          %v2178 = vpop.f32.mrb[0].mxu0
          %v2179 = vpop.f32.mrb[0].mxu0
          %v2180 = vadd.f32 0.0, %v2179
          %v2181 = vpop.f32.mrb[0].mxu0
          %2182 = vmatprep.mubr.bf16.mxu0 0
          %2183 = vmatmul.mubr.bf16.gmra.mrb[0].mxu0 %v2033
          %v2184 = vpop.f32.mrb[0].mxu0
          %v2185 = vadd.f32 0.0, %v2184
          %v2186 = vpop.f32.mrb[0].mxu0
          %v2187 = vpop.f32.mrb[0].mxu0
          %v2188 = vadd.f32 0.0, %v2187
          %v2189 = vpop.f32.mrb[0].mxu0
          %2190 = vmatprep.mubr.bf16.mxu0 0
          %2191 = vmatmul.mubr.bf16.gmra.mrb[0].mxu0 %v2036
          %v2192 = vpop.f32.mrb[0].mxu0
          %v2193 = vadd.f32 0.0, %v2192
          %v2194 = vpop.f32.mrb[0].mxu0
          %v2195 = vpop.f32.mrb[0].mxu0
          %v2196 = vadd.f32 0.0, %v2195
          %v2197 = vpop.f32.mrb[0].mxu0
          %2198 = vdwg.mxu0
          %v2199 = vadd.f32 %v1892, %v2073
          %v2200 = vadd.f32 %v1893, %v2076
          %v2201 = vadd.f32 %v1894, %v2081
          %v2202 = vadd.f32 %v1895, %v2084
          %v2203 = vadd.f32 %v1896, %v2089
          %v2204 = vadd.f32 %v1897, %v2092
          %v2205 = vadd.f32 %v1898, %v2097
          %v2206 = vadd.f32 %v1899, %v2100
          %v2207 = vadd.f32 %v1900, %v2105
          %v2208 = vadd.f32 %v1901, %v2108
          %v2209 = vadd.f32 %v1902, %v2113
          %v2210 = vadd.f32 %v1903, %v2116
          %v2211 = vadd.f32 %v1904, %v2121
          %v2212 = vadd.f32 %v1905, %v2124
          %v2213 = vadd.f32 %v1906, %v2129
          %v2214 = vadd.f32 %v1907, %v2132
          %v2215 = vadd.f32 %v1908, %v2137
          %v2216 = vadd.f32 %v1909, %v2140
          %v2217 = vadd.f32 %v1910, %v2145
          %v2218 = vadd.f32 %v1911, %v2148
          %v2219 = vadd.f32 %v1912, %v2153
          %v2220 = vadd.f32 %v1913, %v2156
          %v2221 = vadd.f32 %v1914, %v2161
          %v2222 = vadd.f32 %v1915, %v2164
          %v2223 = vadd.f32 %v1916, %v2169
          %v2224 = vadd.f32 %v1917, %v2172
          %v2225 = vadd.f32 %v1918, %v2177
          %v2226 = vadd.f32 %v1919, %v2180
          %v2227 = vadd.f32 %v1920, %v2185
          %v2228 = vadd.f32 %v1921, %v2188
          %v2229 = vadd.f32 %v1922, %v2193
          %v2230 = vadd.f32 %v1923, %v2196
          %2231 = vst.msk [vmem:[#allocation2] sm:$0xff] %vm971, %v2199
          %2232 = vst.msk [vmem:[#allocation2 + $0x8] sm:$0xff] %vm971, %v2200
          %2233 = vst.msk [vmem:[#allocation2 + $0x10] sm:$0xff] %vm971, %v2201
          %2234 = vst.msk [vmem:[#allocation2 + $0x18] sm:$0xff] %vm971, %v2202
          %2235 = vst.msk [vmem:[#allocation2 + $0x20] sm:$0xff] %vm971, %v2203
          %2236 = vst.msk [vmem:[#allocation2 + $0x28] sm:$0xff] %vm971, %v2204
          %2237 = vst.msk [vmem:[#allocation2 + $0x30] sm:$0xff] %vm971, %v2205
          %2238 = vst.msk [vmem:[#allocation2 + $0x38] sm:$0xff] %vm971, %v2206
          %2239 = vst.msk [vmem:[#allocation2 + $0x40] sm:$0xff] %vm971, %v2207
          %2240 = vst.msk [vmem:[#allocation2 + $0x48] sm:$0xff] %vm971, %v2208
          %2241 = vst.msk [vmem:[#allocation2 + $0x50] sm:$0xff] %vm971, %v2209
          %2242 = vst.msk [vmem:[#allocation2 + $0x58] sm:$0xff] %vm971, %v2210
          %2243 = vst.msk [vmem:[#allocation2 + $0x60] sm:$0xff] %vm971, %v2211
          %2244 = vst.msk [vmem:[#allocation2 + $0x68] sm:$0xff] %vm971, %v2212
          %2245 = vst.msk [vmem:[#allocation2 + $0x70] sm:$0xff] %vm971, %v2213
          %2246 = vst.msk [vmem:[#allocation2 + $0x78] sm:$0xff] %vm971, %v2214
          %2247 = vst.msk [vmem:[#allocation2 + $0x80] sm:$0xff] %vm971, %v2215
          %2248 = vst.msk [vmem:[#allocation2 + $0x88] sm:$0xff] %vm971, %v2216
          %2249 = vst.msk [vmem:[#allocation2 + $0x90] sm:$0xff] %vm971, %v2217
          %2250 = vst.msk [vmem:[#allocation2 + $0x98] sm:$0xff] %vm971, %v2218
          %2251 = vst.msk [vmem:[#allocation2 + $0xa0] sm:$0xff] %vm971, %v2219
          %2252 = vst.msk [vmem:[#allocation2 + $0xa8] sm:$0xff] %vm971, %v2220
          %2253 = vst.msk [vmem:[#allocation2 + $0xb0] sm:$0xff] %vm971, %v2221
          %2254 = vst.msk [vmem:[#allocation2 + $0xb8] sm:$0xff] %vm971, %v2222
          %2255 = vst.msk [vmem:[#allocation2 + $0xc0] sm:$0xff] %vm971, %v2223
          %2256 = vst.msk [vmem:[#allocation2 + $0xc8] sm:$0xff] %vm971, %v2224
          %2257 = vst.msk [vmem:[#allocation2 + $0xd0] sm:$0xff] %vm971, %v2225
          %2258 = vst.msk [vmem:[#allocation2 + $0xd8] sm:$0xff] %vm971, %v2226
          %2259 = vst.msk [vmem:[#allocation2 + $0xe0] sm:$0xff] %vm971, %v2227
          %2260 = vst.msk [vmem:[#allocation2 + $0xe8] sm:$0xff] %vm971, %v2228
          %2261 = vst.msk [vmem:[#allocation2 + $0xf0] sm:$0xff] %vm971, %v2229
          %2262 = vst.msk [vmem:[#allocation2 + $0xf8] sm:$0xff] %vm971, %v2230
          %v2263 = vld [vmem:[#allocation2] sm:$0xff]
          %v2264 = vld [vmem:[#allocation2 + $0x8] sm:$0xff]
          %v2265 = vld [vmem:[#allocation2 + $0x10] sm:$0xff]
          %v2266 = vld [vmem:[#allocation2 + $0x18] sm:$0xff]
          %v2267 = vld [vmem:[#allocation2 + $0x20] sm:$0xff]
          %v2268 = vld [vmem:[#allocation2 + $0x28] sm:$0xff]
          %v2269 = vld [vmem:[#allocation2 + $0x30] sm:$0xff]
          %v2270 = vld [vmem:[#allocation2 + $0x38] sm:$0xff]
          %v2271 = vld [vmem:[#allocation2 + $0x40] sm:$0xff]
          %v2272 = vld [vmem:[#allocation2 + $0x48] sm:$0xff]
          %v2273 = vld [vmem:[#allocation2 + $0x50] sm:$0xff]
          %v2274 = vld [vmem:[#allocation2 + $0x58] sm:$0xff]
          %v2275 = vld [vmem:[#allocation2 + $0x60] sm:$0xff]
          %v2276 = vld [vmem:[#allocation2 + $0x68] sm:$0xff]
          %v2277 = vld [vmem:[#allocation2 + $0x70] sm:$0xff]
          %v2278 = vld [vmem:[#allocation2 + $0x78] sm:$0xff]
          %v2279 = vld [vmem:[#allocation2 + $0x80] sm:$0xff]
          %v2280 = vld [vmem:[#allocation2 + $0x88] sm:$0xff]
          %v2281 = vld [vmem:[#allocation2 + $0x90] sm:$0xff]
          %v2282 = vld [vmem:[#allocation2 + $0x98] sm:$0xff]
          %v2283 = vld [vmem:[#allocation2 + $0xa0] sm:$0xff]
          %v2284 = vld [vmem:[#allocation2 + $0xa8] sm:$0xff]
          %v2285 = vld [vmem:[#allocation2 + $0xb0] sm:$0xff]
          %v2286 = vld [vmem:[#allocation2 + $0xb8] sm:$0xff]
          %v2287 = vld [vmem:[#allocation2 + $0xc0] sm:$0xff]
          %v2288 = vld [vmem:[#allocation2 + $0xc8] sm:$0xff]
          %v2289 = vld [vmem:[#allocation2 + $0xd0] sm:$0xff]
          %v2290 = vld [vmem:[#allocation2 + $0xd8] sm:$0xff]
          %v2291 = vld [vmem:[#allocation2 + $0xe0] sm:$0xff]
          %v2292 = vld [vmem:[#allocation2 + $0xe8] sm:$0xff]
          %v2293 = vld [vmem:[#allocation2 + $0xf0] sm:$0xff]
          %v2294 = vld [vmem:[#allocation2 + $0xf8] sm:$0xff]
          %v2295 = vld [vmem:[%s4] sm:$0x1]
          %v2297 = vlaneseq
          %v2298 = vshrl.u32 %v2297, 7
          %v2299 = vsub.s32 0, %v2298
          %v2300 = vrot.slane %v2295, %v2299
          %v2302 = vadd.f32 %v2263, %v2300
          %v2303 = vadd.f32 %v2264, %v2300
          %v2304 = vadd.f32 %v2265, %v2300
          %v2305 = vadd.f32 %v2266, %v2300
          %v2306 = vadd.f32 %v2267, %v2300
          %v2307 = vadd.f32 %v2268, %v2300
          %v2308 = vadd.f32 %v2269, %v2300
          %v2309 = vadd.f32 %v2270, %v2300
          %v2310 = vadd.f32 %v2271, %v2300
          %v2311 = vadd.f32 %v2272, %v2300
          %v2312 = vadd.f32 %v2273, %v2300
          %v2313 = vadd.f32 %v2274, %v2300
          %v2314 = vadd.f32 %v2275, %v2300
          %v2315 = vadd.f32 %v2276, %v2300
          %v2316 = vadd.f32 %v2277, %v2300
          %v2317 = vadd.f32 %v2278, %v2300
          %v2318 = vadd.f32 %v2279, %v2300
          %v2319 = vadd.f32 %v2280, %v2300
          %v2320 = vadd.f32 %v2281, %v2300
          %v2321 = vadd.f32 %v2282, %v2300
          %v2322 = vadd.f32 %v2283, %v2300
          %v2323 = vadd.f32 %v2284, %v2300
          %v2324 = vadd.f32 %v2285, %v2300
          %v2325 = vadd.f32 %v2286, %v2300
          %v2326 = vadd.f32 %v2287, %v2300
          %v2327 = vadd.f32 %v2288, %v2300
          %v2328 = vadd.f32 %v2289, %v2300
          %v2329 = vadd.f32 %v2290, %v2300
          %v2330 = vadd.f32 %v2291, %v2300
          %v2331 = vadd.f32 %v2292, %v2300
          %v2332 = vadd.f32 %v2293, %v2300
          %v2333 = vadd.f32 %v2294, %v2300
          %2334 = vst.msk [vmem:[%s250] sm:$0xff] %vm971, %v2302
          %2335 = vst.msk [vmem:[%s250 + $0x8] sm:$0xff] %vm971, %v2303
          %2336 = vst.msk [vmem:[%s250 + $0x10] sm:$0xff] %vm971, %v2304
          %2337 = vst.msk [vmem:[%s250 + $0x18] sm:$0xff] %vm971, %v2305
          %2338 = vst.msk [vmem:[%s250 + $0x20] sm:$0xff] %vm971, %v2306
          %2339 = vst.msk [vmem:[%s250 + $0x28] sm:$0xff] %vm971, %v2307
          %2340 = vst.msk [vmem:[%s250 + $0x30] sm:$0xff] %vm971, %v2308
          %2341 = vst.msk [vmem:[%s250 + $0x38] sm:$0xff] %vm971, %v2309
          %2342 = vst.msk [vmem:[%s250 + $0x40] sm:$0xff] %vm971, %v2310
          %2343 = vst.msk [vmem:[%s250 + $0x48] sm:$0xff] %vm971, %v2311
          %2344 = vst.msk [vmem:[%s250 + $0x50] sm:$0xff] %vm971, %v2312
          %2345 = vst.msk [vmem:[%s250 + $0x58] sm:$0xff] %vm971, %v2313
          %2346 = vst.msk [vmem:[%s250 + $0x60] sm:$0xff] %vm971, %v2314
          %2347 = vst.msk [vmem:[%s250 + $0x68] sm:$0xff] %vm971, %v2315
          %2348 = vst.msk [vmem:[%s250 + $0x70] sm:$0xff] %vm971, %v2316
          %2349 = vst.msk [vmem:[%s250 + $0x78] sm:$0xff] %vm971, %v2317
          %2350 = vst.msk [vmem:[%s250 + $0x80] sm:$0xff] %vm971, %v2318
          %2351 = vst.msk [vmem:[%s250 + $0x88] sm:$0xff] %vm971, %v2319
          %2352 = vst.msk [vmem:[%s250 + $0x90] sm:$0xff] %vm971, %v2320
          %2353 = vst.msk [vmem:[%s250 + $0x98] sm:$0xff] %vm971, %v2321
          %2354 = vst.msk [vmem:[%s250 + $0xa0] sm:$0xff] %vm971, %v2322
          %2355 = vst.msk [vmem:[%s250 + $0xa8] sm:$0xff] %vm971, %v2323
          %2356 = vst.msk [vmem:[%s250 + $0xb0] sm:$0xff] %vm971, %v2324
          %2357 = vst.msk [vmem:[%s250 + $0xb8] sm:$0xff] %vm971, %v2325
          %2358 = vst.msk [vmem:[%s250 + $0xc0] sm:$0xff] %vm971, %v2326
          %2359 = vst.msk [vmem:[%s250 + $0xc8] sm:$0xff] %vm971, %v2327
          %2360 = vst.msk [vmem:[%s250 + $0xd0] sm:$0xff] %vm971, %v2328
          %2361 = vst.msk [vmem:[%s250 + $0xd8] sm:$0xff] %vm971, %v2329
          %2362 = vst.msk [vmem:[%s250 + $0xe0] sm:$0xff] %vm971, %v2330
          %2363 = vst.msk [vmem:[%s250 + $0xe8] sm:$0xff] %vm971, %v2331
          %2364 = vst.msk [vmem:[%s250 + $0xf0] sm:$0xff] %vm971, %v2332
          %2365 = vst.msk [vmem:[%s250 + $0xf8] sm:$0xff] %vm971, %v2333
        $region52: #{vitdet_neck_conv.1} parent=39 // pred_fallthru
          _
        %s2366 = sand.u32 %s156, 1
        %s2367 = scalar_lea.sflag [#allocation5], %s2366
        %s2368 = sand.u32 %s156, 1
        %s2369 = smul.addr %s2368, 256
        %s2370 = scalar_lea.vmem [#allocation4], %s2369
        // Predicated region
        $region53: #{vitdet_neck_conv.1} parent=39 // pred_check
          %p2371 = pneg %p166
        $region54: #{vitdet_neck_conv.1} parent=39 // pred_check_branch
          %2373 = sbr.rel (%p2371) target = $region56
        $region55: #{vitdet_neck_conv.1} parent=39 // pred_region
          %s2375 = ssub.s32 4096, 4096
          %2376 = vsyncadd %s2367, %s2375
          %s2377 = smul.addr %s23, 32
          %s2378 = smul.addr %s2377, 128
          %s2379 = scalar_lea.hbm %s5, %s2378
          %s2380 = sshll.u32 %s2370, 4
          %s2381 = int_to_ptr.vmem [resolvable:$true] %s2380
          %2386 = dma.vmem_to_hbm [thread:$0]  %s2381, 4096, %s2379, %s2367, 128, 128, 8
        $region56: #{vitdet_neck_conv.1} parent=39 // pred_fallthru
          _
      $region40: #{vitdet_neck_conv.1} parent=5 // pred_fallthru
        _
      %p2387 = scmp.le.s32.totalorder 2, %s14
      // Predicated region
      $region57: #{vitdet_neck_conv.1} parent=5 // pred_check
        %p2388 = pneg %p2387
      $region58: #{vitdet_neck_conv.1} parent=5 // pred_check_branch
        %2390 = sbr.rel (%p2388) target = $region60
      $region59: #{vitdet_neck_conv.1} parent=5 // pred_region
        %s2391 = ssub.s32 %s14, 2
        // Predicated region
        $region61: #{vitdet_neck_conv.1} parent=59 // pred_check
          %p2392 = pneg %p172
        $region62: #{vitdet_neck_conv.1} parent=59 // pred_check_branch
          %2394 = sbr.rel (%p2392) target = $region64
        $region63: #{vitdet_neck_conv.1} parent=59 // pred_region
          %s2395 = sand.u32 %s157, 1
          %s2396 = scalar_lea.sflag [#allocation5], %s2395
          %s2397 = sand.u32 %s157, 1
          %s2398 = smul.addr %s2397, 256
          %s2399 = scalar_lea.vmem [#allocation4], %s2398
          %2400 = dma.done %s2396, 4096
        $region64: #{vitdet_neck_conv.1} parent=59 // pred_fallthru
          _
      $region60: #{vitdet_neck_conv.1} parent=5 // pred_fallthru
        _
    $region6: #{vitdet_neck_conv.1} parent=1 // loop_footer
      %s18 = sadd.s32 1, %s14
    $region7: #{vitdet_neck_conv.1} parent=1 // loop_footer_branch
      %13 = sbr.rel target = $region3
    $region8: #{vitdet_neck_conv.1} parent=1 // loop_exit
      _
    %2401 = vsyncpa [#allocation5], 1
    %s2402 = scalar_lea.sflag [#allocation5], 1
    %2403 = vsyncpa %s2402, 1

</llo_original>
